<compile_context>
chip_gen: v7x
topology: tpu7x:2x2x1
jax: 0.10.0
libtpu: 0.0.40
codegen_flags: <defaults>
</compile_context>

<pallas_src>
import jax
import jax.numpy as jnp
from jax import lax
from jax.experimental import pallas as pl
from jax.experimental.pallas import tpu as pltpu
from functools import partial


def _fuse_kernel(orig_ref, w_ref, b_ref, pref_ref, out_ref, wts_ref, *, e_chunk):
    # orig_ref : (M, E, TN)  gathered embeddings, nodes on lanes
    # w_ref    : (P, E)      transform_layer Linear weight (nn.Linear layout)
    # b_ref    : (P, 1)      transform_layer Linear bias (column)
    # pref_ref : (P, M)      meta_preference, transposed (metapaths on lanes)
    # out_ref  : (E, TN)     fused embedding (nodes on lanes)
    # wts_ref  : (M, TN)     meta attention weights (lane-dense)
    M = orig_ref.shape[0]
    E = orig_ref.shape[1]
    eps = 1e-8

    # Hoisted loop-invariant loads / reductions.
    w = w_ref[...]                                        # (P, E)
    b = b_ref[...]                                        # (P, 1)
    pref = pref_ref[...]                                  # (P, M)
    p_sq = jnp.sum(pref * pref, axis=0, keepdims=True)    # (1, M)

    # Per-metapath cosine similarity -> unnormalized softmax weight exp(sim).
    # sim is a cosine similarity in [-1, 1], so exp() cannot overflow and the
    # usual max-subtraction chain is skipped (saves ~2*M (1,TN) VPU ops per tile).
    exps = []
    for m in range(M):
        x = orig_ref[m]                                   # (E, TN)
        # NOTE: default MXU precision (matches the pure-JAX reference).  If
        # bit-level parity with an f32 CPU/PyTorch reference is required, add
        # precision=lax.Precision.HIGHEST here (MXU has huge slack).
        t = jnp.tanh(
            jnp.dot(w, x, preferred_element_type=jnp.float32) + b
        )                                                 # (P, TN)
        p_col = pref[:, m:m + 1]                          # (P, 1)
        num = jnp.sum(t * p_col, axis=0, keepdims=True)   # (1, TN)
        t_sq = jnp.sum(t * t, axis=0, keepdims=True)      # (1, TN)
        prod = t_sq * p_sq[:, m:m + 1]                    # (1, TN)
        # torch.cosine_similarity clamp: num / max(sqrt(prod), eps)
        #   == num * min(rsqrt(prod), 1/eps)   (rsqrt runs on the EUP slot)
        inv_den = jnp.minimum(lax.rsqrt(prod), 1.0 / eps)
        exps.append(jnp.exp(num * inv_den))               # (1, TN)

    denom = exps[0]
    for m in range(1, M):
        denom = denom + exps[m]
    inv_denom = pl.reciprocal(denom, approx=False)        # precise (keeps 1e-5 agreement)
    wts = [e * inv_denom for e in exps]                   # M x (1, TN)

    # Single lane-dense store of the whole (M, TN) weights tile.
    wts_ref[...] = jnp.concatenate(wts, axis=0).astype(wts_ref.dtype)

    # Weighted sum over metapaths, chunked along E and streamed into out_ref so
    # the live accumulator is bounded regardless of the node-tile size (a full
    # (E, TN) accumulator at TN=2048 would be 64 vregs -> guaranteed spills,
    # which would saturate v5e's single vector-store slot).
    n_chunks = E // e_chunk

    @pl.loop(0, n_chunks)
    def _(ci):
        e0 = pl.multiple_of(ci * e_chunk, e_chunk)
        acc = orig_ref[0, pl.ds(e0, e_chunk), :] * wts[0]     # sublane broadcast
        for m in range(1, M):
            acc = acc + orig_ref[m, pl.ds(e0, e_chunk), :] * wts[m]
        out_ref[pl.ds(e0, e_chunk), :] = acc.astype(out_ref.dtype)


def _round_up(x, m):
    return ((x + m - 1) // m) * m


def _ceil_div(a, b):
    return -(-a // b)


@partial(jax.jit, static_argnames=("tile_n",))
def metapath_preference_attention_pallas(orig_men, w_pe, b_p, pref_mp, *, tile_n=2048):
    """Fused metapath preference attention.

    orig_men : [M, E, N]  gathered per-metapath embeddings (node axis last / on lanes)
    w_pe     : [P, E]     nn.Linear weight (out_features, in_features) -- used as-is
    b_p      : [P]        nn.Linear bias
    pref_mp  : [M, P]     meta_preference parameter

    Returns (fused_embedding [E, N], meta_weights [M, N]) in node-major layout.
    The node-major layouts are returned as-is (no device-side transpose): on this
    bandwidth-bound op each transpose would be a full extra HBM pass.  Transpose
    on the host / in the consumer if [N, E] views are needed.
    """
    M, E, N = orig_men.shape
    P = w_pe.shape[0]

    # Lane-aligned node tile; NO input padding.  grid = ceil(N / tn): the ragged
    # last tile reads undefined lanes past N (garbage/NaN stays confined to those
    # lanes -- every reduction is over sublanes/metapaths, never across lanes) and
    # Pallas drops its out-of-bounds output writes.
    tn = _round_up(min(tile_n, _round_up(N, 128)), 128)
    steps = _ceil_div(N, tn)
    # v7x megacore: with >1 step, prefer an even step count so both TensorCores
    # get balanced work (VMEM footprint is MiBs vs 64 MiB, so only steps matter).
    if steps > 1 and steps % 2 == 1:
        tn_alt = _round_up(_ceil_div(N, steps + 1), 128)
        if 256 <= tn_alt < tn:
            tn = tn_alt
            steps = _ceil_div(N, tn)
    grid = (steps,)

    # Sublane-aligned chunk size for the weighted-sum epilogue.
    e_chunk = 8 if E % 8 == 0 else E

    b_col = b_p.reshape(P, 1)
    pref_pm = pref_mp.T                                   # (P, M)

    out_shapes = (
        jax.ShapeDtypeStruct((E, N), jnp.float32),
        jax.ShapeDtypeStruct((M, N), jnp.float32),
    )
    fused_en, wts_mn = pl.pallas_call(
        partial(_fuse_kernel, e_chunk=e_chunk),
        out_shape=out_shapes,
        grid_spec=pltpu.PrefetchScalarGridSpec(
            num_scalar_prefetch=0,
            grid=grid,
            in_specs=[
                pl.BlockSpec((M, E, tn), lambda i: (0, 0, i)),  # embeddings, nodes on lanes
                pl.BlockSpec((P, E), lambda i: (0, 0)),         # Linear weight
                pl.BlockSpec((P, 1), lambda i: (0, 0)),         # Linear bias (column)
                pl.BlockSpec((P, M), lambda i: (0, 0)),         # meta_preference (transposed)
            ],
            out_specs=[
                pl.BlockSpec((E, tn), lambda i: (0, i)),        # fused embedding, lane-dense
                pl.BlockSpec((M, tn), lambda i: (0, i)),        # meta weights, lane-dense
            ],
        ),
        compiler_params=pltpu.CompilerParams(
            dimension_semantics=("parallel",),
        ),
    )(orig_men, w_pe, b_col, pref_pm)
    return fused_en, wts_mn


def _reference(orig_men, w_pe, b_p, pref_mp):
    """Pure-JAX reference mirroring the PyTorch forward (for a correctness check)."""
    orig = jnp.transpose(orig_men, (2, 0, 1))                          # [N, M, E]
    t = jnp.tanh(jnp.einsum("nme,pe->nmp", orig, w_pe) + b_p)          # [N, M, P]
    pref = pref_mp[None, :, :]
    num = jnp.sum(t * pref, axis=-1)
    den = jnp.maximum(jnp.linalg.norm(t, axis=-1) * jnp.linalg.norm(pref, axis=-1), 1e-8)
    sim = num / den                                                    # [N, M]
    w = jax.nn.softmax(sim, axis=1)                                    # [N, M]
    fused = jnp.sum(orig * w[:, :, None], axis=1)                      # [N, E]
    return fused, w


if __name__ == "__main__":
    # Deterministic configuration (mirrors args.* of the module).
    meta_num = 3              # M
    embedding_dim = 32        # E
    meta_preference_dim = 16  # P
    n_train = 1000            # N: deliberately NOT a multiple of 128 -> exercises the ragged tile
    nodes_per_meta = 1200     # size of each per-metapath embedding table

    key = jax.random.PRNGKey(0)
    k_emb, k_pref, k_w, k_b, k_perm = jax.random.split(key, 5)

    # Per-metapath embedding tables (the meta_embedding dict) + index maps (glue).
    meta_names = [f"meta{m}" for m in range(meta_num)]
    emb_keys = jax.random.split(k_emb, meta_num)
    meta_embedding = {
        name: jax.random.normal(emb_keys[m], (nodes_per_meta, embedding_dim), jnp.float32)
        for m, name in enumerate(meta_names)
    }
    train_nodes = list(range(1, n_train + 1))  # paper ids
    perm_keys = jax.random.split(k_perm, meta_num)
    meta_node_indexmap = {}
    for m, name in enumerate(meta_names):
        perm_host = jax.device_get(jax.random.permutation(perm_keys[m], nodes_per_meta))
        meta_node_indexmap[name] = {paper: int(perm_host[i]) for i, paper in enumerate(train_nodes)}

    # Parameters (deterministic inits matching the PyTorch module's shapes).
    xav = (6.0 / (meta_num + meta_preference_dim)) ** 0.5
    meta_preference = jax.random.uniform(
        k_pref, (meta_num, meta_preference_dim), jnp.float32, -xav, xav
    )
    lin_bound = 1.0 / (embedding_dim ** 0.5)
    lin_w = jax.random.uniform(
        k_w, (meta_preference_dim, embedding_dim), jnp.float32, -lin_bound, lin_bound
    )  # (P, E), nn.Linear storage layout -- used directly by the kernel
    lin_b = jax.random.uniform(
        k_b, (meta_preference_dim,), jnp.float32, -lin_bound, lin_bound
    )

    # Glue: gather original_embedding exactly like the torch.stack comprehension
    # (vectorized per metapath), then present it node-last ([M, E, N]).
    # TODO(synk): the gather + [M,N,E]->[M,E,N] transpose are separate XLA HBM
    # passes; fusing them into the kernel's input DMA (scalar-prefetched index
    # tables + per-row make_async_copy) is possible but the 128-byte row DMAs are
    # descriptor-bound, so XLA's gather is kept.
    gathered = jnp.stack(
        [
            meta_embedding[name][
                jnp.array([meta_node_indexmap[name][p] for p in train_nodes], dtype=jnp.int32)
            ]
            for name in meta_names
        ],
        axis=0,
    )                                                   # [M, N, E]
    orig_men = jnp.transpose(gathered, (0, 2, 1))       # [M, E, N]

    fused_en, wts_mn = metapath_preference_attention_pallas(
        orig_men, lin_w, lin_b, meta_preference
    )
    fused_en = jax.block_until_ready(fused_en)
    wts_mn = jax.block_until_ready(wts_mn)

    # Glue: build the vectors dict like the PyTorch module (including vectors[0]).
    # The kernel returns node-major [E, N]; the .T below is a zero-copy numpy view
    # on the host, not an extra device pass.
    # TODO(synk): the module also prints meta_weights; omitted to keep stdout clean.
    weighted_host = jax.device_get(fused_en).T          # [N, E] numpy view
    vectors = {paper: weighted_host[i] for i, paper in enumerate(train_nodes)}
    vectors[0] = jnp.zeros((embedding_dim,), jnp.float32)

    # Correctness check against a pure-JAX reference of the same math.
    ref_weighted, ref_weights = _reference(orig_men, lin_w, lin_b, meta_preference)
    assert jnp.allclose(fused_en, ref_weighted.T, atol=1e-5, rtol=1e-5)
    assert jnp.allclose(wts_mn, ref_weights.T, atol=1e-5, rtol=1e-5)

    # Also exercise the multi-step (even) grid with a ragged last tile.
    fused_en2, wts_mn2 = metapath_preference_attention_pallas(
        orig_men, lin_w, lin_b, meta_preference, tile_n=256
    )
    fused_en2 = jax.block_until_ready(fused_en2)
    wts_mn2 = jax.block_until_ready(wts_mn2)
    assert jnp.allclose(fused_en2, ref_weighted.T, atol=1e-5, rtol=1e-5)
    assert jnp.allclose(wts_mn2, ref_weights.T, atol=1e-5, rtol=1e-5)

    print("KERNEL_OK")
</pallas_src>

<mosaic_0001>
module attributes {stable_mosaic.version = 11 : i64} {
  func.func @_fuse_kernel(%arg0: i32, %arg1: memref<3x32x1024xf32, #tpu.memory_space<vmem>>, %arg2: memref<16x32xf32, #tpu.memory_space<vmem>>, %arg3: memref<16x1xf32, #tpu.memory_space<vmem>>, %arg4: memref<16x3xf32, #tpu.memory_space<vmem>>, %arg5: memref<32x1024xf32, #tpu.memory_space<vmem>>, %arg6: memref<3x1024xf32, #tpu.memory_space<vmem>>) attributes {dimension_semantics = [#tpu.dimension_semantics<parallel>], iteration_bounds = array<i64: 1>, scalar_prefetch = 0 : i64, scratch_operands = 0 : i64, tpu.core_type = #tpu.core_type<tc>, window_params = [{transform_indices = @transform_0, window_bounds = array<i64: 3, 32, 1024>}, {pipeline_mode = #tpu.pipeline_mode<synchronous>, transform_indices = @transform_1, window_bounds = array<i64: 16, 32>}, {pipeline_mode = #tpu.pipeline_mode<synchronous>, transform_indices = @transform_2, window_bounds = array<i64: 16, 1>}, {pipeline_mode = #tpu.pipeline_mode<synchronous>, transform_indices = @transform_3, window_bounds = array<i64: 16, 3>}, {transform_indices = @transform_4, window_bounds = array<i64: 32, 1024>}, {transform_indices = @transform_5, window_bounds = array<i64: 3, 1024>}]} {
    %c0 = arith.constant 0 : index
    %c0_0 = arith.constant 0 : index
    %0 = vector.load %arg2[%c0, %c0_0] : memref<16x32xf32, #tpu.memory_space<vmem>>, vector<16x32xf32>
    %c0_1 = arith.constant 0 : index
    %c0_2 = arith.constant 0 : index
    %1 = vector.load %arg3[%c0_1, %c0_2] : memref<16x1xf32, #tpu.memory_space<vmem>>, vector<16x1xf32>
    %c0_3 = arith.constant 0 : index
    %c0_4 = arith.constant 0 : index
    %2 = vector.load %arg4[%c0_3, %c0_4] : memref<16x3xf32, #tpu.memory_space<vmem>>, vector<16x3xf32>
    %3 = arith.mulf %2, %2 : vector<16x3xf32>
    %cst = arith.constant dense<0.000000e+00> : vector<3xf32>
    %4 = vector.multi_reduction <add>, %3, %cst [0] : vector<16x3xf32> to vector<3xf32>
    %5 = vector.shape_cast %4 : vector<3xf32> to vector<1x3xf32>
    %c0_5 = arith.constant 0 : index
    %c0_6 = arith.constant 0 : index
    %c0_7 = arith.constant 0 : index
    %6 = vector.load %arg1[%c0_5, %c0_6, %c0_7] : memref<3x32x1024xf32, #tpu.memory_space<vmem>>, vector<1x32x1024xf32>
    %7 = vector.shape_cast %6 : vector<1x32x1024xf32> to vector<32x1024xf32>
    %cst_8 = arith.constant dense<0.000000e+00> : vector<16x1024xf32>
    %8 = tpu.matmul %0, %7, %cst_8 {dimension_numbers = #tpu.dot_dimension_numbers<[1], [0], [0], [1], [0, 0, 1, 1], [], []>} : vector<16x32xf32>, vector<32x1024xf32>, vector<16x1024xf32> -> vector<16x1024xf32>
    %9 = vector.broadcast %1 : vector<16x1xf32> to vector<16x1024xf32>
    %10 = arith.addf %8, %9 : vector<16x1024xf32>
    %11 = math.tanh %10 : vector<16x1024xf32>
    %12 = vector.extract_strided_slice %2 {offsets = [0, 0], sizes = [16, 1], strides = [1, 1]} : vector<16x3xf32> to vector<16x1xf32>
    %13 = vector.broadcast %12 : vector<16x1xf32> to vector<16x1024xf32>
    %14 = arith.mulf %11, %13 : vector<16x1024xf32>
    %cst_9 = arith.constant dense<0.000000e+00> : vector<1024xf32>
    %15 = vector.multi_reduction <add>, %14, %cst_9 [0] : vector<16x1024xf32> to vector<1024xf32>
    %16 = vector.shape_cast %15 : vector<1024xf32> to vector<1x1024xf32>
    %17 = arith.mulf %11, %11 : vector<16x1024xf32>
    %cst_10 = arith.constant dense<0.000000e+00> : vector<1024xf32>
    %18 = vector.multi_reduction <add>, %17, %cst_10 [0] : vector<16x1024xf32> to vector<1024xf32>
    %19 = vector.shape_cast %18 : vector<1024xf32> to vector<1x1024xf32>
    %20 = vector.extract_strided_slice %5 {offsets = [0, 0], sizes = [1, 1], strides = [1, 1]} : vector<1x3xf32> to vector<1x1xf32>
    %21 = vector.broadcast %20 : vector<1x1xf32> to vector<1x1024xf32>
    %22 = arith.mulf %19, %21 : vector<1x1024xf32>
    %23 = math.rsqrt %22 : vector<1x1024xf32>
    %cst_11 = arith.constant 1.000000e+08 : f32
    %24 = vector.broadcast %cst_11 : f32 to vector<1x1024xf32>
    %25 = arith.minimumf %23, %24 : vector<1x1024xf32>
    %26 = arith.mulf %16, %25 : vector<1x1024xf32>
    %27 = math.exp %26 : vector<1x1024xf32>
    %c1 = arith.constant 1 : index
    %c0_12 = arith.constant 0 : index
    %c0_13 = arith.constant 0 : index
    %28 = vector.load %arg1[%c1, %c0_12, %c0_13] : memref<3x32x1024xf32, #tpu.memory_space<vmem>>, vector<1x32x1024xf32>
    %29 = vector.shape_cast %28 : vector<1x32x1024xf32> to vector<32x1024xf32>
    %cst_14 = arith.constant dense<0.000000e+00> : vector<16x1024xf32>
    %30 = tpu.matmul %0, %29, %cst_14 {dimension_numbers = #tpu.dot_dimension_numbers<[1], [0], [0], [1], [0, 0, 1, 1], [], []>} : vector<16x32xf32>, vector<32x1024xf32>, vector<16x1024xf32> -> vector<16x1024xf32>
    %31 = vector.broadcast %1 : vector<16x1xf32> to vector<16x1024xf32>
    %32 = arith.addf %30, %31 : vector<16x1024xf32>
    %33 = math.tanh %32 : vector<16x1024xf32>
    %34 = vector.extract_strided_slice %2 {offsets = [0, 1], sizes = [16, 1], strides = [1, 1]} : vector<16x3xf32> to vector<16x1xf32>
    %35 = vector.broadcast %34 : vector<16x1xf32> to vector<16x1024xf32>
    %36 = arith.mulf %33, %35 : vector<16x1024xf32>
    %cst_15 = arith.constant dense<0.000000e+00> : vector<1024xf32>
    %37 = vector.multi_reduction <add>, %36, %cst_15 [0] : vector<16x1024xf32> to vector<1024xf32>
    %38 = vector.shape_cast %37 : vector<1024xf32> to vector<1x1024xf32>
    %39 = arith.mulf %33, %33 : vector<16x1024xf32>
    %cst_16 = arith.constant dense<0.000000e+00> : vector<1024xf32>
    %40 = vector.multi_reduction <add>, %39, %cst_16 [0] : vector<16x1024xf32> to vector<1024xf32>
    %41 = vector.shape_cast %40 : vector<1024xf32> to vector<1x1024xf32>
    %42 = vector.extract_strided_slice %5 {offsets = [0, 1], sizes = [1, 1], strides = [1, 1]} : vector<1x3xf32> to vector<1x1xf32>
    %43 = vector.broadcast %42 : vector<1x1xf32> to vector<1x1024xf32>
    %44 = arith.mulf %41, %43 : vector<1x1024xf32>
    %45 = math.rsqrt %44 : vector<1x1024xf32>
    %cst_17 = arith.constant 1.000000e+08 : f32
    %46 = vector.broadcast %cst_17 : f32 to vector<1x1024xf32>
    %47 = arith.minimumf %45, %46 : vector<1x1024xf32>
    %48 = arith.mulf %38, %47 : vector<1x1024xf32>
    %49 = math.exp %48 : vector<1x1024xf32>
    %c2 = arith.constant 2 : index
    %c0_18 = arith.constant 0 : index
    %c0_19 = arith.constant 0 : index
    %50 = vector.load %arg1[%c2, %c0_18, %c0_19] : memref<3x32x1024xf32, #tpu.memory_space<vmem>>, vector<1x32x1024xf32>
    %51 = vector.shape_cast %50 : vector<1x32x1024xf32> to vector<32x1024xf32>
    %cst_20 = arith.constant dense<0.000000e+00> : vector<16x1024xf32>
    %52 = tpu.matmul %0, %51, %cst_20 {dimension_numbers = #tpu.dot_dimension_numbers<[1], [0], [0], [1], [0, 0, 1, 1], [], []>} : vector<16x32xf32>, vector<32x1024xf32>, vector<16x1024xf32> -> vector<16x1024xf32>
    %53 = vector.broadcast %1 : vector<16x1xf32> to vector<16x1024xf32>
    %54 = arith.addf %52, %53 : vector<16x1024xf32>
    %55 = math.tanh %54 : vector<16x1024xf32>
    %56 = vector.extract_strided_slice %2 {offsets = [0, 2], sizes = [16, 1], strides = [1, 1]} : vector<16x3xf32> to vector<16x1xf32>
    %57 = vector.broadcast %56 : vector<16x1xf32> to vector<16x1024xf32>
    %58 = arith.mulf %55, %57 : vector<16x1024xf32>
    %cst_21 = arith.constant dense<0.000000e+00> : vector<1024xf32>
    %59 = vector.multi_reduction <add>, %58, %cst_21 [0] : vector<16x1024xf32> to vector<1024xf32>
    %60 = vector.shape_cast %59 : vector<1024xf32> to vector<1x1024xf32>
    %61 = arith.mulf %55, %55 : vector<16x1024xf32>
    %cst_22 = arith.constant dense<0.000000e+00> : vector<1024xf32>
    %62 = vector.multi_reduction <add>, %61, %cst_22 [0] : vector<16x1024xf32> to vector<1024xf32>
    %63 = vector.shape_cast %62 : vector<1024xf32> to vector<1x1024xf32>
    %64 = vector.extract_strided_slice %5 {offsets = [0, 2], sizes = [1, 1], strides = [1, 1]} : vector<1x3xf32> to vector<1x1xf32>
    %65 = vector.broadcast %64 : vector<1x1xf32> to vector<1x1024xf32>
    %66 = arith.mulf %63, %65 : vector<1x1024xf32>
    %67 = math.rsqrt %66 : vector<1x1024xf32>
    %cst_23 = arith.constant 1.000000e+08 : f32
    %68 = vector.broadcast %cst_23 : f32 to vector<1x1024xf32>
    %69 = arith.minimumf %67, %68 : vector<1x1024xf32>
    %70 = arith.mulf %60, %69 : vector<1x1024xf32>
    %71 = math.exp %70 : vector<1x1024xf32>
    %72 = arith.addf %27, %49 : vector<1x1024xf32>
    %73 = arith.addf %72, %71 : vector<1x1024xf32>
    %74 = tpu.reciprocal %73 : vector<1x1024xf32> -> vector<1x1024xf32>
    %75 = arith.mulf %27, %74 : vector<1x1024xf32>
    %76 = arith.mulf %49, %74 : vector<1x1024xf32>
    %77 = arith.mulf %71, %74 : vector<1x1024xf32>
    %78 = tpu.concatenate %75, %76, %77 in 0 : vector<1x1024xf32>, vector<1x1024xf32>, vector<1x1024xf32> -> vector<3x1024xf32>
    %c0_24 = arith.constant 0 : index
    %c0_25 = arith.constant 0 : index
    %79 = vector.load %arg6[%c0_24, %c0_25] : memref<3x1024xf32, #tpu.memory_space<vmem>>, vector<3x1024xf32>
    tpu.vector_store %arg6[%c0_24, %c0_25], %78 {strides = array<i32>} : memref<3x1024xf32, #tpu.memory_space<vmem>>, vector<3x1024xf32>,
    %c0_i32 = arith.constant 0 : i32
    %c4_i32 = arith.constant 4 : i32
    %80 = arith.addi %c0_i32, %c4_i32 : i32
    %c1_i32 = arith.constant 1 : i32
    scf.for %arg7 = %c0_i32 to %80 step %c1_i32  : i32 {
      %c1_i32_27 = arith.constant 1 : i32
      %81 = arith.muli %arg7, %c1_i32_27 : i32
      %c0_i32_28 = arith.constant 0 : i32
      %82 = arith.addi %c0_i32_28, %81 : i32
      %c8_i32 = arith.constant 8 : i32
      %83 = arith.muli %82, %c8_i32 : i32
      %84 = tpu.assume_multiple %83, 8 : i32
      %c0_29 = arith.constant 0 : index
      %85 = arith.index_cast %84 : i32 to index
      %c0_30 = arith.constant 0 : index
      %86 = vector.load %arg1[%c0_29, %85, %c0_30] : memref<3x32x1024xf32, #tpu.memory_space<vmem>>, vector<1x8x1024xf32>
      %87 = vector.shape_cast %86 : vector<1x8x1024xf32> to vector<8x1024xf32>
      %88 = vector.broadcast %75 : vector<1x1024xf32> to vector<8x1024xf32>
      %89 = arith.mulf %87, %88 : vector<8x1024xf32>
      %c1_31 = arith.constant 1 : index
      %90 = arith.index_cast %84 : i32 to index
      %c0_32 = arith.constant 0 : index
      %91 = vector.load %arg1[%c1_31, %90, %c0_32] : memref<3x32x1024xf32, #tpu.memory_space<vmem>>, vector<1x8x1024xf32>
      %92 = vector.shape_cast %91 : vector<1x8x1024xf32> to vector<8x1024xf32>
      %93 = vector.broadcast %76 : vector<1x1024xf32> to vector<8x1024xf32>
      %94 = arith.mulf %92, %93 : vector<8x1024xf32>
      %95 = arith.addf %89, %94 : vector<8x1024xf32>
      %c2_33 = arith.constant 2 : index
      %96 = arith.index_cast %84 : i32 to index
      %c0_34 = arith.constant 0 : index
      %97 = vector.load %arg1[%c2_33, %96, %c0_34] : memref<3x32x1024xf32, #tpu.memory_space<vmem>>, vector<1x8x1024xf32>
      %98 = vector.shape_cast %97 : vector<1x8x1024xf32> to vector<8x1024xf32>
      %99 = vector.broadcast %77 : vector<1x1024xf32> to vector<8x1024xf32>
      %100 = arith.mulf %98, %99 : vector<8x1024xf32>
      %101 = arith.addf %95, %100 : vector<8x1024xf32>
      %102 = arith.index_cast %84 : i32 to index
      %c0_35 = arith.constant 0 : index
      %103 = vector.load %arg5[%102, %c0_35] : memref<32x1024xf32, #tpu.memory_space<vmem>>, vector<8x1024xf32>
      tpu.vector_store %arg5[%102, %c0_35], %101 {strides = array<i32>} : memref<32x1024xf32, #tpu.memory_space<vmem>>, vector<8x1024xf32>,
    }
    %c4_i32_26 = arith.constant 4 : i32
    return
  }
  func.func @transform_0(%arg0: i32) -> (i32, i32, i32) {
    %c0_i32 = arith.constant 0 : i32
    %c0_i32_0 = arith.constant 0 : i32
    %c0_i32_1 = arith.constant 0 : i32
    return %c0_i32, %c0_i32_0, %arg0 : i32, i32, i32
  }
  func.func @transform_1(%arg0: i32) -> (i32, i32) {
    %c0_i32 = arith.constant 0 : i32
    %c0_i32_0 = arith.constant 0 : i32
    %c0_i32_1 = arith.constant 0 : i32
    return %c0_i32, %c0_i32_0 : i32, i32
  }
  func.func @transform_2(%arg0: i32) -> (i32, i32) {
    %c0_i32 = arith.constant 0 : i32
    %c0_i32_0 = arith.constant 0 : i32
    %c0_i32_1 = arith.constant 0 : i32
    return %c0_i32, %c0_i32_0 : i32, i32
  }
  func.func @transform_3(%arg0: i32) -> (i32, i32) {
    %c0_i32 = arith.constant 0 : i32
    %c0_i32_0 = arith.constant 0 : i32
    %c0_i32_1 = arith.constant 0 : i32
    return %c0_i32, %c0_i32_0 : i32, i32
  }
  func.func @transform_4(%arg0: i32) -> (i32, i32) {
    %c0_i32 = arith.constant 0 : i32
    %c0_i32_0 = arith.constant 0 : i32
    return %c0_i32, %arg0 : i32, i32
  }
  func.func @transform_5(%arg0: i32) -> (i32, i32) {
    %c0_i32 = arith.constant 0 : i32
    %c0_i32_0 = arith.constant 0 : i32
    return %c0_i32, %arg0 : i32, i32
  }
}

</mosaic_0001>

<llo_original>
// kernel: metapath_preference_attention_pallas.1
$region0: #{metapath_preference_attention_pallas.1}
  #allocation0 [shape = 'u32[]', space=smem, size = 0x4, offset = 0x4, fixed_abs, tag = 'smem constant byte address 0x4 - core index']
  #allocation1 [shape = 'u32[144,128]{1,0:T(1,128)}', space=vmem, size = 0x12000, scoped, tag = 'internal scratch']
  %s0 = inlined_call_operand.hbm [shape: f32[3,32,1000], index: 0, kind: input, shape index: {}]
  %s1 = inlined_call_operand.vmem [shape: f32[16,32], index: 1, kind: input, shape index: {}]
  %s2 = inlined_call_operand.vmem [shape: f32[16,1], index: 2, kind: input, shape index: {}]
  %s3 = inlined_call_operand.vmem [shape: f32[16,3], index: 3, kind: input, shape index: {}]
  %s4 = inlined_call_operand.hbm [shape: f32[32,1000], index: 4, kind: output, shape index: {0}]
  %s5 = inlined_call_operand.hbm [shape: f32[3,1000], index: 5, kind: output, shape index: {1}]
  %6 = xla_tuple %s4, %s5
  %s7 = sld [smem:[#allocation0]]
  $region45: #{metapath_preference_attention_pallas.1} parent=0
    _
  %s9 = ssub.s32 1, %s7
  %s10 = scalar_select 0, %s9, %s7
  $region1: #{metapath_preference_attention_pallas.1} parent=0
    #allocation2 [shape = 'u8[393216]{0}', space=vmem, size = 0x60000, scoped, tag = 'input window, operand 0, single buffered']
    #allocation3 [shape = 's32[1]{0}', space=sflag, size = 0x4, scoped, tag = 'scoped memory for metapath_preference_attention_pallas.1']
    #allocation4 [shape = 's32[1]{0}', space=sflag, size = 0x4, scoped, tag = 'scoped memory for metapath_preference_attention_pallas.1']
    #allocation5 [shape = 'u8[131072]{0}', space=vmem, size = 0x20000, scoped, tag = 'output window, operand 0, single buffered']
    #allocation6 [shape = 'u8[16384]{0}', space=vmem, size = 0x4000, scoped, tag = 'output window, operand 1, single buffered']
    #allocation7 [shape = 's32[1]{0}', space=sflag, size = 0x4, scoped, tag = 'scoped memory for metapath_preference_attention_pallas.1']
    %11 = vsyncpa [#allocation3], 0
    %12 = vsyncpa [#allocation4], 0
    %13 = vsyncpa [#allocation7], 0
    // Predicated region
    $region2: #{metapath_preference_attention_pallas.1} parent=1 // pred_check
      _
    $region3: #{metapath_preference_attention_pallas.1} parent=1 // pred_check_branch
      %15 = sbr.rel (0) target = $region5
    $region4: #{metapath_preference_attention_pallas.1} parent=1 // pred_region
      %s17 = ssub.s32 12288, 12288
      %18 = vsyncadd [#allocation3], %s17
      %s19 = sshll.u32 [#allocation2], 4
      %s20 = int_to_ptr.vmem [resolvable:$true] %s19
      %25 = dma.hbm_to_vmem [thread:$0]  %s0, 12288, %s20, [#allocation3], 1024, 1024, 64
    $region5: #{metapath_preference_attention_pallas.1} parent=1 // pred_fallthru
      _
    // Predicated region
    $region6: #{metapath_preference_attention_pallas.1} parent=1 // pred_check
      _
    $region7: #{metapath_preference_attention_pallas.1} parent=1 // pred_check_branch
      %27 = sbr.rel (0) target = $region9
    $region8: #{metapath_preference_attention_pallas.1} parent=1 // pred_region
      _
    $region9: #{metapath_preference_attention_pallas.1} parent=1 // pred_fallthru
      _
    // Predicated region
    $region10: #{metapath_preference_attention_pallas.1} parent=1 // pred_check
      _
    $region11: #{metapath_preference_attention_pallas.1} parent=1 // pred_check_branch
      %29 = sbr.rel (0) target = $region13
    $region12: #{metapath_preference_attention_pallas.1} parent=1 // pred_region
      _
    $region13: #{metapath_preference_attention_pallas.1} parent=1 // pred_fallthru
      _
    // Predicated region
    $region14: #{metapath_preference_attention_pallas.1} parent=1 // pred_check
      _
    $region15: #{metapath_preference_attention_pallas.1} parent=1 // pred_check_branch
      %31 = sbr.rel (0) target = $region17
    $region16: #{metapath_preference_attention_pallas.1} parent=1 // pred_region
      _
    $region17: #{metapath_preference_attention_pallas.1} parent=1 // pred_fallthru
      _
    // Predicated region
    $region18: #{metapath_preference_attention_pallas.1} parent=1 // pred_check
      _
    $region19: #{metapath_preference_attention_pallas.1} parent=1 // pred_check_branch
      %33 = sbr.rel (0) target = $region21
    $region20: #{metapath_preference_attention_pallas.1} parent=1 // pred_region
      %34 = dma.done [#allocation3], 12288
    $region21: #{metapath_preference_attention_pallas.1} parent=1 // pred_fallthru
      _
    %v35 = vld [vmem:[%s1] sm:$0xff]
    %v36 = vld [vmem:[%s1 + $0x8] sm:$0xff]
    %v37 = vld [vmem:[%s2] sm:$0xff]
    %v38 = vld [vmem:[%s2 + $0x8] sm:$0xff]
    %v39 = vld [vmem:[%s3] sm:$0xff]
    %v40 = vld [vmem:[%s3 + $0x8] sm:$0xff]
    %v41 = vmul.f32 %v39, %v39
    %v42 = vmul.f32 %v40, %v40
    %vm43 = vcmask 23552
    %v44 = vsel %vm43, %v41, 0.0
    %v45 = vsel %vm43, %v42, 0.0
    %v46 = vadd.f32 %v44, %v45
    %v47 = vrot.slane %v46, 4
    %v48 = vadd.f32 %v46, %v47
    %v49 = vrot.slane %v48, 2
    %v50 = vadd.f32 %v48, %v49
    %v51 = vrot.slane %v50, 1
    %v52 = vadd.f32 %v50, %v51
    %v53 = vld [vmem:[#allocation2] sm:$0xff]
    %v54 = vld [vmem:[#allocation2 + $0x8] sm:$0xff]
    %v55 = vld [vmem:[#allocation2 + $0x10] sm:$0xff]
    %v56 = vld [vmem:[#allocation2 + $0x18] sm:$0xff]
    %v57 = vld [vmem:[#allocation2 + $0x20] sm:$0xff]
    %v58 = vld [vmem:[#allocation2 + $0x28] sm:$0xff]
    %v59 = vld [vmem:[#allocation2 + $0x30] sm:$0xff]
    %v60 = vld [vmem:[#allocation2 + $0x38] sm:$0xff]
    %v61 = vld [vmem:[#allocation2 + $0x40] sm:$0xff]
    %v62 = vld [vmem:[#allocation2 + $0x48] sm:$0xff]
    %v63 = vld [vmem:[#allocation2 + $0x50] sm:$0xff]
    %v64 = vld [vmem:[#allocation2 + $0x58] sm:$0xff]
    %v65 = vld [vmem:[#allocation2 + $0x60] sm:$0xff]
    %v66 = vld [vmem:[#allocation2 + $0x68] sm:$0xff]
    %v67 = vld [vmem:[#allocation2 + $0x70] sm:$0xff]
    %v68 = vld [vmem:[#allocation2 + $0x78] sm:$0xff]
    %v69 = vld [vmem:[#allocation2 + $0x80] sm:$0xff]
    %v70 = vld [vmem:[#allocation2 + $0x88] sm:$0xff]
    %v71 = vld [vmem:[#allocation2 + $0x90] sm:$0xff]
    %v72 = vld [vmem:[#allocation2 + $0x98] sm:$0xff]
    %v73 = vld [vmem:[#allocation2 + $0xa0] sm:$0xff]
    %v74 = vld [vmem:[#allocation2 + $0xa8] sm:$0xff]
    %v75 = vld [vmem:[#allocation2 + $0xb0] sm:$0xff]
    %v76 = vld [vmem:[#allocation2 + $0xb8] sm:$0xff]
    %v77 = vld [vmem:[#allocation2 + $0xc0] sm:$0xff]
    %v78 = vld [vmem:[#allocation2 + $0xc8] sm:$0xff]
    %v79 = vld [vmem:[#allocation2 + $0xd0] sm:$0xff]
    %v80 = vld [vmem:[#allocation2 + $0xd8] sm:$0xff]
    %v81 = vld [vmem:[#allocation2 + $0xe0] sm:$0xff]
    %v82 = vld [vmem:[#allocation2 + $0xe8] sm:$0xff]
    %v83 = vld [vmem:[#allocation2 + $0xf0] sm:$0xff]
    %v84 = vld [vmem:[#allocation2 + $0xf8] sm:$0xff]
    %86 = vset.pattern.permute.xlu0 0
    %87 = vperm.xlu0 %86, %v37
    %v88 = vpop.permute.xlu0 %87
    %91 = vset.pattern.permute.xlu0 0
    %92 = vperm.xlu0 %91, %v38
    %v93 = vpop.permute.xlu0 %92
    %vm95 = vcmask 261120
    %v97 = vsel %vm95, %v35, 0
    %v100 = vsel %vm95, %v36, 0
    %102 = vmatprep.subr.mxu0 %v54
    %103 = vmatpush1.msra.mxu0 %v53
    %104 = vmatprep.subr.mxu0 %v62
    %105 = vmatpush1.msra.mxu0 %v61
    %106 = vmatprep.subr.mxu0 %v70
    %107 = vmatpush1.msra.mxu0 %v69
    %108 = vmatprep.subr.mxu0 %v78
    %109 = vmatpush1.msra.mxu0 %v77
    %110 = vmatprep.subr.mxu0 0.0
    %111 = vmatpush1.msra.mxu0 0.0
    %112 = vmatprep.subr.mxu0 0.0
    %113 = vmatpush1.msra.mxu0 0.0
    %114 = vmatprep.subr.mxu0 0.0
    %115 = vmatpush1.msra.mxu0 0.0
    %116 = vmatprep.subr.mxu0 0.0
    %117 = vmatpush1.msra.mxu0 0.0
    %118 = vmatprep.subr.mxu0 0.0
    %119 = vmatpush1.msra.mxu0 0.0
    %120 = vmatprep.subr.mxu0 0.0
    %121 = vmatpush1.msra.mxu0 0.0
    %122 = vmatprep.subr.mxu0 0.0
    %123 = vmatpush1.msra.mxu0 0.0
    %124 = vmatprep.subr.mxu0 0.0
    %125 = vmatpush1.msra.mxu0 0.0
    %126 = vmatprep.subr.mxu0 0.0
    %127 = vmatpush1.msra.mxu0 0.0
    %128 = vmatprep.subr.mxu0 0.0
    %129 = vmatpush1.msra.mxu0 0.0
    %130 = vmatprep.subr.mxu0 0.0
    %131 = vmatpush1.msra.mxu0 0.0
    %132 = vmatprep.subr.mxu0 0.0
    %133 = vmatpush1.msra.mxu0 0.0
    %134 = vmatprep.subr.mxu0 0.0
    %135 = vmatpush1.msra.mxu0 0.0
    %136 = vmatprep.subr.mxu0 0.0
    %137 = vmatpush1.msra.mxu0 0.0
    %138 = vmatprep.subr.mxu0 0.0
    %139 = vmatpush1.msra.mxu0 0.0
    %140 = vmatprep.subr.mxu0 0.0
    %141 = vmatpush1.msra.mxu0 0.0
    %142 = vmatprep.subr.mxu0 0.0
    %143 = vmatpush1.msra.mxu0 0.0
    %144 = vmatprep.subr.mxu0 0.0
    %145 = vmatpush1.msra.mxu0 0.0
    %146 = vmatprep.subr.mxu0 0.0
    %147 = vmatpush1.msra.mxu0 0.0
    %148 = vmatprep.subr.mxu0 0.0
    %149 = vmatpush1.msra.mxu0 0.0
    %150 = vmatprep.subr.mxu0 0.0
    %151 = vmatpush1.msra.mxu0 0.0
    %152 = vmatprep.subr.mxu0 0.0
    %153 = vmatpush1.msra.mxu0 0.0
    %154 = vmatprep.subr.mxu0 0.0
    %155 = vmatpush1.msra.mxu0 0.0
    %156 = vmatprep.subr.mxu0 0.0
    %157 = vmatpush1.msra.mxu0 0.0
    %158 = vmatprep.subr.mxu0 0.0
    %159 = vmatpush1.msra.mxu0 0.0
    %160 = vmatprep.subr.mxu0 0.0
    %161 = vmatpush1.msra.mxu0 0.0
    %162 = vmatprep.subr.mxu0 0.0
    %163 = vmatpush1.msra.mxu0 0.0
    %164 = vmatprep.subr.mxu0 0.0
    %165 = vmatpush1.msra.mxu0 0.0
    %166 = vmatprep.mubr.f32.mxu0 0.0
    %167 = vmatmul.mubr.f32.gmra.mrb[0].mxu0 %v97
    %v168 = vpop.f32.mrb[0].mxu0
    %v169 = vadd.f32 %v88, %v168
    %v170 = vpop.f32.mrb[0].mxu0
    %v171 = vadd.f32 %v88, %v170
    %172 = vmatprep.mubr.f32.mxu0 0.0
    %173 = vmatmul.mubr.f32.gmra.mrb[0].mxu0 %v100
    %v174 = vpop.f32.mrb[0].mxu0
    %v175 = vadd.f32 %v93, %v174
    %v176 = vpop.f32.mrb[0].mxu0
    %v177 = vadd.f32 %v93, %v176
    %178 = vdwg.mxu0
    %179 = vmatprep.subr.mxu0 %v56
    %180 = vmatpush1.msra.mxu0 %v55
    %181 = vmatprep.subr.mxu0 %v64
    %182 = vmatpush1.msra.mxu0 %v63
    %183 = vmatprep.subr.mxu0 %v72
    %184 = vmatpush1.msra.mxu0 %v71
    %185 = vmatprep.subr.mxu0 %v80
    %186 = vmatpush1.msra.mxu0 %v79
    %187 = vmatprep.subr.mxu0 0.0
    %188 = vmatpush1.msra.mxu0 0.0
    %189 = vmatprep.subr.mxu0 0.0
    %190 = vmatpush1.msra.mxu0 0.0
    %191 = vmatprep.subr.mxu0 0.0
    %192 = vmatpush1.msra.mxu0 0.0
    %193 = vmatprep.subr.mxu0 0.0
    %194 = vmatpush1.msra.mxu0 0.0
    %195 = vmatprep.subr.mxu0 0.0
    %196 = vmatpush1.msra.mxu0 0.0
    %197 = vmatprep.subr.mxu0 0.0
    %198 = vmatpush1.msra.mxu0 0.0
    %199 = vmatprep.subr.mxu0 0.0
    %200 = vmatpush1.msra.mxu0 0.0
    %201 = vmatprep.subr.mxu0 0.0
    %202 = vmatpush1.msra.mxu0 0.0
    %203 = vmatprep.subr.mxu0 0.0
    %204 = vmatpush1.msra.mxu0 0.0
    %205 = vmatprep.subr.mxu0 0.0
    %206 = vmatpush1.msra.mxu0 0.0
    %207 = vmatprep.subr.mxu0 0.0
    %208 = vmatpush1.msra.mxu0 0.0
    %209 = vmatprep.subr.mxu0 0.0
    %210 = vmatpush1.msra.mxu0 0.0
    %211 = vmatprep.subr.mxu0 0.0
    %212 = vmatpush1.msra.mxu0 0.0
    %213 = vmatprep.subr.mxu0 0.0
    %214 = vmatpush1.msra.mxu0 0.0
    %215 = vmatprep.subr.mxu0 0.0
    %216 = vmatpush1.msra.mxu0 0.0
    %217 = vmatprep.subr.mxu0 0.0
    %218 = vmatpush1.msra.mxu0 0.0
    %219 = vmatprep.subr.mxu0 0.0
    %220 = vmatpush1.msra.mxu0 0.0
    %221 = vmatprep.subr.mxu0 0.0
    %222 = vmatpush1.msra.mxu0 0.0
    %223 = vmatprep.subr.mxu0 0.0
    %224 = vmatpush1.msra.mxu0 0.0
    %225 = vmatprep.subr.mxu0 0.0
    %226 = vmatpush1.msra.mxu0 0.0
    %227 = vmatprep.subr.mxu0 0.0
    %228 = vmatpush1.msra.mxu0 0.0
    %229 = vmatprep.subr.mxu0 0.0
    %230 = vmatpush1.msra.mxu0 0.0
    %231 = vmatprep.subr.mxu0 0.0
    %232 = vmatpush1.msra.mxu0 0.0
    %233 = vmatprep.subr.mxu0 0.0
    %234 = vmatpush1.msra.mxu0 0.0
    %235 = vmatprep.subr.mxu0 0.0
    %236 = vmatpush1.msra.mxu0 0.0
    %237 = vmatprep.subr.mxu0 0.0
    %238 = vmatpush1.msra.mxu0 0.0
    %239 = vmatprep.subr.mxu0 0.0
    %240 = vmatpush1.msra.mxu0 0.0
    %241 = vmatprep.subr.mxu0 0.0
    %242 = vmatpush1.msra.mxu0 0.0
    %243 = vmatprep.mubr.f32.mxu0 0.0
    %244 = vmatmul.mubr.f32.gmra.mrb[0].mxu0 %v97
    %v245 = vpop.f32.mrb[0].mxu0
    %v246 = vadd.f32 %v88, %v245
    %v247 = vpop.f32.mrb[0].mxu0
    %v248 = vadd.f32 %v88, %v247
    %249 = vmatprep.mubr.f32.mxu0 0.0
    %250 = vmatmul.mubr.f32.gmra.mrb[0].mxu0 %v100
    %v251 = vpop.f32.mrb[0].mxu0
    %v252 = vadd.f32 %v93, %v251
    %v253 = vpop.f32.mrb[0].mxu0
    %v254 = vadd.f32 %v93, %v253
    %255 = vdwg.mxu0
    %256 = vmatprep.subr.mxu0 %v58
    %257 = vmatpush1.msra.mxu0 %v57
    %258 = vmatprep.subr.mxu0 %v66
    %259 = vmatpush1.msra.mxu0 %v65
    %260 = vmatprep.subr.mxu0 %v74
    %261 = vmatpush1.msra.mxu0 %v73
    %262 = vmatprep.subr.mxu0 %v82
    %263 = vmatpush1.msra.mxu0 %v81
    %264 = vmatprep.subr.mxu0 0.0
    %265 = vmatpush1.msra.mxu0 0.0
    %266 = vmatprep.subr.mxu0 0.0
    %267 = vmatpush1.msra.mxu0 0.0
    %268 = vmatprep.subr.mxu0 0.0
    %269 = vmatpush1.msra.mxu0 0.0
    %270 = vmatprep.subr.mxu0 0.0
    %271 = vmatpush1.msra.mxu0 0.0
    %272 = vmatprep.subr.mxu0 0.0
    %273 = vmatpush1.msra.mxu0 0.0
    %274 = vmatprep.subr.mxu0 0.0
    %275 = vmatpush1.msra.mxu0 0.0
    %276 = vmatprep.subr.mxu0 0.0
    %277 = vmatpush1.msra.mxu0 0.0
    %278 = vmatprep.subr.mxu0 0.0
    %279 = vmatpush1.msra.mxu0 0.0
    %280 = vmatprep.subr.mxu0 0.0
    %281 = vmatpush1.msra.mxu0 0.0
    %282 = vmatprep.subr.mxu0 0.0
    %283 = vmatpush1.msra.mxu0 0.0
    %284 = vmatprep.subr.mxu0 0.0
    %285 = vmatpush1.msra.mxu0 0.0
    %286 = vmatprep.subr.mxu0 0.0
    %287 = vmatpush1.msra.mxu0 0.0
    %288 = vmatprep.subr.mxu0 0.0
    %289 = vmatpush1.msra.mxu0 0.0
    %290 = vmatprep.subr.mxu0 0.0
    %291 = vmatpush1.msra.mxu0 0.0
    %292 = vmatprep.subr.mxu0 0.0
    %293 = vmatpush1.msra.mxu0 0.0
    %294 = vmatprep.subr.mxu0 0.0
    %295 = vmatpush1.msra.mxu0 0.0
    %296 = vmatprep.subr.mxu0 0.0
    %297 = vmatpush1.msra.mxu0 0.0
    %298 = vmatprep.subr.mxu0 0.0
    %299 = vmatpush1.msra.mxu0 0.0
    %300 = vmatprep.subr.mxu0 0.0
    %301 = vmatpush1.msra.mxu0 0.0
    %302 = vmatprep.subr.mxu0 0.0
    %303 = vmatpush1.msra.mxu0 0.0
    %304 = vmatprep.subr.mxu0 0.0
    %305 = vmatpush1.msra.mxu0 0.0
    %306 = vmatprep.subr.mxu0 0.0
    %307 = vmatpush1.msra.mxu0 0.0
    %308 = vmatprep.subr.mxu0 0.0
    %309 = vmatpush1.msra.mxu0 0.0
    %310 = vmatprep.subr.mxu0 0.0
    %311 = vmatpush1.msra.mxu0 0.0
    %312 = vmatprep.subr.mxu0 0.0
    %313 = vmatpush1.msra.mxu0 0.0
    %314 = vmatprep.subr.mxu0 0.0
    %315 = vmatpush1.msra.mxu0 0.0
    %316 = vmatprep.subr.mxu0 0.0
    %317 = vmatpush1.msra.mxu0 0.0
    %318 = vmatprep.subr.mxu0 0.0
    %319 = vmatpush1.msra.mxu0 0.0
    %320 = vmatprep.mubr.f32.mxu0 0.0
    %321 = vmatmul.mubr.f32.gmra.mrb[0].mxu0 %v97
    %v322 = vpop.f32.mrb[0].mxu0
    %v323 = vadd.f32 %v88, %v322
    %v324 = vpop.f32.mrb[0].mxu0
    %v325 = vadd.f32 %v88, %v324
    %326 = vmatprep.mubr.f32.mxu0 0.0
    %327 = vmatmul.mubr.f32.gmra.mrb[0].mxu0 %v100
    %v328 = vpop.f32.mrb[0].mxu0
    %v329 = vadd.f32 %v93, %v328
    %v330 = vpop.f32.mrb[0].mxu0
    %v331 = vadd.f32 %v93, %v330
    %332 = vdwg.mxu0
    %333 = vmatprep.subr.mxu0 %v60
    %334 = vmatpush1.msra.mxu0 %v59
    %335 = vmatprep.subr.mxu0 %v68
    %336 = vmatpush1.msra.mxu0 %v67
    %337 = vmatprep.subr.mxu0 %v76
    %338 = vmatpush1.msra.mxu0 %v75
    %339 = vmatprep.subr.mxu0 %v84
    %340 = vmatpush1.msra.mxu0 %v83
    %341 = vmatprep.subr.mxu0 0.0
    %342 = vmatpush1.msra.mxu0 0.0
    %343 = vmatprep.subr.mxu0 0.0
    %344 = vmatpush1.msra.mxu0 0.0
    %345 = vmatprep.subr.mxu0 0.0
    %346 = vmatpush1.msra.mxu0 0.0
    %347 = vmatprep.subr.mxu0 0.0
    %348 = vmatpush1.msra.mxu0 0.0
    %349 = vmatprep.subr.mxu0 0.0
    %350 = vmatpush1.msra.mxu0 0.0
    %351 = vmatprep.subr.mxu0 0.0
    %352 = vmatpush1.msra.mxu0 0.0
    %353 = vmatprep.subr.mxu0 0.0
    %354 = vmatpush1.msra.mxu0 0.0
    %355 = vmatprep.subr.mxu0 0.0
    %356 = vmatpush1.msra.mxu0 0.0
    %357 = vmatprep.subr.mxu0 0.0
    %358 = vmatpush1.msra.mxu0 0.0
    %359 = vmatprep.subr.mxu0 0.0
    %360 = vmatpush1.msra.mxu0 0.0
    %361 = vmatprep.subr.mxu0 0.0
    %362 = vmatpush1.msra.mxu0 0.0
    %363 = vmatprep.subr.mxu0 0.0
    %364 = vmatpush1.msra.mxu0 0.0
    %365 = vmatprep.subr.mxu0 0.0
    %366 = vmatpush1.msra.mxu0 0.0
    %367 = vmatprep.subr.mxu0 0.0
    %368 = vmatpush1.msra.mxu0 0.0
    %369 = vmatprep.subr.mxu0 0.0
    %370 = vmatpush1.msra.mxu0 0.0
    %371 = vmatprep.subr.mxu0 0.0
    %372 = vmatpush1.msra.mxu0 0.0
    %373 = vmatprep.subr.mxu0 0.0
    %374 = vmatpush1.msra.mxu0 0.0
    %375 = vmatprep.subr.mxu0 0.0
    %376 = vmatpush1.msra.mxu0 0.0
    %377 = vmatprep.subr.mxu0 0.0
    %378 = vmatpush1.msra.mxu0 0.0
    %379 = vmatprep.subr.mxu0 0.0
    %380 = vmatpush1.msra.mxu0 0.0
    %381 = vmatprep.subr.mxu0 0.0
    %382 = vmatpush1.msra.mxu0 0.0
    %383 = vmatprep.subr.mxu0 0.0
    %384 = vmatpush1.msra.mxu0 0.0
    %385 = vmatprep.subr.mxu0 0.0
    %386 = vmatpush1.msra.mxu0 0.0
    %387 = vmatprep.subr.mxu0 0.0
    %388 = vmatpush1.msra.mxu0 0.0
    %389 = vmatprep.subr.mxu0 0.0
    %390 = vmatpush1.msra.mxu0 0.0
    %391 = vmatprep.subr.mxu0 0.0
    %392 = vmatpush1.msra.mxu0 0.0
    %393 = vmatprep.subr.mxu0 0.0
    %394 = vmatpush1.msra.mxu0 0.0
    %395 = vmatprep.subr.mxu0 0.0
    %396 = vmatpush1.msra.mxu0 0.0
    %397 = vmatprep.mubr.f32.mxu0 0.0
    %398 = vmatmul.mubr.f32.gmra.mrb[0].mxu0 %v97
    %v399 = vpop.f32.mrb[0].mxu0
    %v400 = vadd.f32 %v88, %v399
    %v401 = vpop.f32.mrb[0].mxu0
    %v402 = vadd.f32 %v88, %v401
    %403 = vmatprep.mubr.f32.mxu0 0.0
    %404 = vmatmul.mubr.f32.gmra.mrb[0].mxu0 %v100
    %v405 = vpop.f32.mrb[0].mxu0
    %v406 = vadd.f32 %v93, %v405
    %v407 = vpop.f32.mrb[0].mxu0
    %v408 = vadd.f32 %v93, %v407
    %409 = vdwg.mxu0
    %v410 = vtanh.pop %v169
    %v411 = vtanh.pop %v171
    %v412 = vtanh.pop %v246
    %v413 = vtanh.pop %v248
    %v414 = vtanh.pop %v323
    %v415 = vtanh.pop %v325
    %v416 = vtanh.pop %v400
    %v417 = vtanh.pop %v402
    %v418 = vtanh.pop %v175
    %v419 = vtanh.pop %v177
    %v420 = vtanh.pop %v252
    %v421 = vtanh.pop %v254
    %v422 = vtanh.pop %v329
    %v423 = vtanh.pop %v331
    %v424 = vtanh.pop %v406
    %v425 = vtanh.pop %v408
    %427 = vset.pattern.permute.xlu0 0
    %428 = vperm.xlu0 %427, %v39
    %v429 = vpop.permute.xlu0 %428
    %432 = vset.pattern.permute.xlu0 0
    %433 = vperm.xlu0 %432, %v40
    %v434 = vpop.permute.xlu0 %433
    %v436 = vmul.f32 %v410, %v429
    %v437 = vmul.f32 %v411, %v429
    %v438 = vmul.f32 %v412, %v429
    %v439 = vmul.f32 %v413, %v429
    %v440 = vmul.f32 %v414, %v429
    %v441 = vmul.f32 %v415, %v429
    %v442 = vmul.f32 %v416, %v429
    %v443 = vmul.f32 %v417, %v429
    %v444 = vmul.f32 %v418, %v434
    %v445 = vmul.f32 %v419, %v434
    %v446 = vmul.f32 %v420, %v434
    %v447 = vmul.f32 %v421, %v434
    %v448 = vmul.f32 %v422, %v434
    %v449 = vmul.f32 %v423, %v434
    %v450 = vmul.f32 %v424, %v434
    %v451 = vmul.f32 %v425, %v434
    %v452 = vadd.f32 %v436, %v444
    %v453 = vrot.slane %v452, 4
    %v454 = vadd.f32 %v452, %v453
    %v455 = vrot.slane %v454, 2
    %v456 = vadd.f32 %v454, %v455
    %v457 = vrot.slane %v456, 1
    %v458 = vadd.f32 %v456, %v457
    %v459 = vadd.f32 %v437, %v445
    %v460 = vrot.slane %v459, 4
    %v461 = vadd.f32 %v459, %v460
    %v462 = vrot.slane %v461, 2
    %v463 = vadd.f32 %v461, %v462
    %v464 = vrot.slane %v463, 1
    %v465 = vadd.f32 %v463, %v464
    %v466 = vadd.f32 %v438, %v446
    %v467 = vrot.slane %v466, 4
    %v468 = vadd.f32 %v466, %v467
    %v469 = vrot.slane %v468, 2
    %v470 = vadd.f32 %v468, %v469
    %v471 = vrot.slane %v470, 1
    %v472 = vadd.f32 %v470, %v471
    %v473 = vadd.f32 %v439, %v447
    %v474 = vrot.slane %v473, 4
    %v475 = vadd.f32 %v473, %v474
    %v476 = vrot.slane %v475, 2
    %v477 = vadd.f32 %v475, %v476
    %v478 = vrot.slane %v477, 1
    %v479 = vadd.f32 %v477, %v478
    %v480 = vadd.f32 %v440, %v448
    %v481 = vrot.slane %v480, 4
    %v482 = vadd.f32 %v480, %v481
    %v483 = vrot.slane %v482, 2
    %v484 = vadd.f32 %v482, %v483
    %v485 = vrot.slane %v484, 1
    %v486 = vadd.f32 %v484, %v485
    %v487 = vadd.f32 %v441, %v449
    %v488 = vrot.slane %v487, 4
    %v489 = vadd.f32 %v487, %v488
    %v490 = vrot.slane %v489, 2
    %v491 = vadd.f32 %v489, %v490
    %v492 = vrot.slane %v491, 1
    %v493 = vadd.f32 %v491, %v492
    %v494 = vadd.f32 %v442, %v450
    %v495 = vrot.slane %v494, 4
    %v496 = vadd.f32 %v494, %v495
    %v497 = vrot.slane %v496, 2
    %v498 = vadd.f32 %v496, %v497
    %v499 = vrot.slane %v498, 1
    %v500 = vadd.f32 %v498, %v499
    %v501 = vadd.f32 %v443, %v451
    %v502 = vrot.slane %v501, 4
    %v503 = vadd.f32 %v501, %v502
    %v504 = vrot.slane %v503, 2
    %v505 = vadd.f32 %v503, %v504
    %v506 = vrot.slane %v505, 1
    %v507 = vadd.f32 %v505, %v506
    %v508 = vmul.f32 %v410, %v410
    %v509 = vmul.f32 %v411, %v411
    %v510 = vmul.f32 %v412, %v412
    %v511 = vmul.f32 %v413, %v413
    %v512 = vmul.f32 %v414, %v414
    %v513 = vmul.f32 %v415, %v415
    %v514 = vmul.f32 %v416, %v416
    %v515 = vmul.f32 %v417, %v417
    %v516 = vmul.f32 %v418, %v418
    %v517 = vmul.f32 %v419, %v419
    %v518 = vmul.f32 %v420, %v420
    %v519 = vmul.f32 %v421, %v421
    %v520 = vmul.f32 %v422, %v422
    %v521 = vmul.f32 %v423, %v423
    %v522 = vmul.f32 %v424, %v424
    %v523 = vmul.f32 %v425, %v425
    %v524 = vadd.f32 %v508, %v516
    %v525 = vrot.slane %v524, 4
    %v526 = vadd.f32 %v524, %v525
    %v527 = vrot.slane %v526, 2
    %v528 = vadd.f32 %v526, %v527
    %v529 = vrot.slane %v528, 1
    %v530 = vadd.f32 %v528, %v529
    %v531 = vadd.f32 %v509, %v517
    %v532 = vrot.slane %v531, 4
    %v533 = vadd.f32 %v531, %v532
    %v534 = vrot.slane %v533, 2
    %v535 = vadd.f32 %v533, %v534
    %v536 = vrot.slane %v535, 1
    %v537 = vadd.f32 %v535, %v536
    %v538 = vadd.f32 %v510, %v518
    %v539 = vrot.slane %v538, 4
    %v540 = vadd.f32 %v538, %v539
    %v541 = vrot.slane %v540, 2
    %v542 = vadd.f32 %v540, %v541
    %v543 = vrot.slane %v542, 1
    %v544 = vadd.f32 %v542, %v543
    %v545 = vadd.f32 %v511, %v519
    %v546 = vrot.slane %v545, 4
    %v547 = vadd.f32 %v545, %v546
    %v548 = vrot.slane %v547, 2
    %v549 = vadd.f32 %v547, %v548
    %v550 = vrot.slane %v549, 1
    %v551 = vadd.f32 %v549, %v550
    %v552 = vadd.f32 %v512, %v520
    %v553 = vrot.slane %v552, 4
    %v554 = vadd.f32 %v552, %v553
    %v555 = vrot.slane %v554, 2
    %v556 = vadd.f32 %v554, %v555
    %v557 = vrot.slane %v556, 1
    %v558 = vadd.f32 %v556, %v557
    %v559 = vadd.f32 %v513, %v521
    %v560 = vrot.slane %v559, 4
    %v561 = vadd.f32 %v559, %v560
    %v562 = vrot.slane %v561, 2
    %v563 = vadd.f32 %v561, %v562
    %v564 = vrot.slane %v563, 1
    %v565 = vadd.f32 %v563, %v564
    %v566 = vadd.f32 %v514, %v522
    %v567 = vrot.slane %v566, 4
    %v568 = vadd.f32 %v566, %v567
    %v569 = vrot.slane %v568, 2
    %v570 = vadd.f32 %v568, %v569
    %v571 = vrot.slane %v570, 1
    %v572 = vadd.f32 %v570, %v571
    %v573 = vadd.f32 %v515, %v523
    %v574 = vrot.slane %v573, 4
    %v575 = vadd.f32 %v573, %v574
    %v576 = vrot.slane %v575, 2
    %v577 = vadd.f32 %v575, %v576
    %v578 = vrot.slane %v577, 1
    %v579 = vadd.f32 %v577, %v578
    %581 = vset.pattern.permute.xlu0 0
    %582 = vperm.xlu0 %581, %v52
    %v583 = vpop.permute.xlu0 %582
    %v585 = vmul.f32 %v530, %v583
    %v586 = vmul.f32 %v537, %v583
    %v587 = vmul.f32 %v544, %v583
    %v588 = vmul.f32 %v551, %v583
    %v589 = vmul.f32 %v558, %v583
    %v590 = vmul.f32 %v565, %v583
    %v591 = vmul.f32 %v572, %v583
    %v592 = vmul.f32 %v579, %v583
    %v593 = vrsqrt.pop %v585
    %v594 = vrsqrt.pop %v586
    %v595 = vrsqrt.pop %v587
    %v596 = vrsqrt.pop %v588
    %v597 = vrsqrt.pop %v589
    %v598 = vrsqrt.pop %v590
    %v599 = vrsqrt.pop %v591
    %v600 = vrsqrt.pop %v592
    %v601 = vmin.f32 %v593, 1e+08
    %v602 = vmin.f32 %v594, 1e+08
    %v603 = vmin.f32 %v595, 1e+08
    %v604 = vmin.f32 %v596, 1e+08
    %v605 = vmin.f32 %v597, 1e+08
    %v606 = vmin.f32 %v598, 1e+08
    %v607 = vmin.f32 %v599, 1e+08
    %v608 = vmin.f32 %v600, 1e+08
    %v609 = vmul.f32 %v458, %v601
    %v610 = vmul.f32 %v465, %v602
    %v611 = vmul.f32 %v472, %v603
    %v612 = vmul.f32 %v479, %v604
    %v613 = vmul.f32 %v486, %v605
    %v614 = vmul.f32 %v493, %v606
    %v615 = vmul.f32 %v500, %v607
    %v616 = vmul.f32 %v507, %v608
    %v617 = vmul.f32 %v609, 1.442695
    %v618 = vpow.pop %v617
    %v619 = vmul.f32 %v610, 1.442695
    %v620 = vpow.pop %v619
    %v621 = vmul.f32 %v611, 1.442695
    %v622 = vpow.pop %v621
    %v623 = vmul.f32 %v612, 1.442695
    %v624 = vpow.pop %v623
    %v625 = vmul.f32 %v613, 1.442695
    %v626 = vpow.pop %v625
    %v627 = vmul.f32 %v614, 1.442695
    %v628 = vpow.pop %v627
    %v629 = vmul.f32 %v615, 1.442695
    %v630 = vpow.pop %v629
    %v631 = vmul.f32 %v616, 1.442695
    %v632 = vpow.pop %v631
    %s633 = scalar_lea.vmem [#allocation2], 256
    %v634 = vld [vmem:[%s633] sm:$0xff]
    %v635 = vld [vmem:[%s633 + $0x8] sm:$0xff]
    %v636 = vld [vmem:[%s633 + $0x10] sm:$0xff]
    %v637 = vld [vmem:[%s633 + $0x18] sm:$0xff]
    %v638 = vld [vmem:[%s633 + $0x20] sm:$0xff]
    %v639 = vld [vmem:[%s633 + $0x28] sm:$0xff]
    %v640 = vld [vmem:[%s633 + $0x30] sm:$0xff]
    %v641 = vld [vmem:[%s633 + $0x38] sm:$0xff]
    %v642 = vld [vmem:[%s633 + $0x40] sm:$0xff]
    %v643 = vld [vmem:[%s633 + $0x48] sm:$0xff]
    %v644 = vld [vmem:[%s633 + $0x50] sm:$0xff]
    %v645 = vld [vmem:[%s633 + $0x58] sm:$0xff]
    %v646 = vld [vmem:[%s633 + $0x60] sm:$0xff]
    %v647 = vld [vmem:[%s633 + $0x68] sm:$0xff]
    %v648 = vld [vmem:[%s633 + $0x70] sm:$0xff]
    %v649 = vld [vmem:[%s633 + $0x78] sm:$0xff]
    %v650 = vld [vmem:[%s633 + $0x80] sm:$0xff]
    %v651 = vld [vmem:[%s633 + $0x88] sm:$0xff]
    %v652 = vld [vmem:[%s633 + $0x90] sm:$0xff]
    %v653 = vld [vmem:[%s633 + $0x98] sm:$0xff]
    %v654 = vld [vmem:[%s633 + $0xa0] sm:$0xff]
    %v655 = vld [vmem:[%s633 + $0xa8] sm:$0xff]
    %v656 = vld [vmem:[%s633 + $0xb0] sm:$0xff]
    %v657 = vld [vmem:[%s633 + $0xb8] sm:$0xff]
    %v658 = vld [vmem:[%s633 + $0xc0] sm:$0xff]
    %v659 = vld [vmem:[%s633 + $0xc8] sm:$0xff]
    %v660 = vld [vmem:[%s633 + $0xd0] sm:$0xff]
    %v661 = vld [vmem:[%s633 + $0xd8] sm:$0xff]
    %v662 = vld [vmem:[%s633 + $0xe0] sm:$0xff]
    %v663 = vld [vmem:[%s633 + $0xe8] sm:$0xff]
    %v664 = vld [vmem:[%s633 + $0xf0] sm:$0xff]
    %v665 = vld [vmem:[%s633 + $0xf8] sm:$0xff]
    %666 = vmatprep.subr.mxu0 %v635
    %667 = vmatpush1.msra.mxu0 %v634
    %668 = vmatprep.subr.mxu0 %v643
    %669 = vmatpush1.msra.mxu0 %v642
    %670 = vmatprep.subr.mxu0 %v651
    %671 = vmatpush1.msra.mxu0 %v650
    %672 = vmatprep.subr.mxu0 %v659
    %673 = vmatpush1.msra.mxu0 %v658
    %674 = vmatprep.subr.mxu0 0.0
    %675 = vmatpush1.msra.mxu0 0.0
    %676 = vmatprep.subr.mxu0 0.0
    %677 = vmatpush1.msra.mxu0 0.0
    %678 = vmatprep.subr.mxu0 0.0
    %679 = vmatpush1.msra.mxu0 0.0
    %680 = vmatprep.subr.mxu0 0.0
    %681 = vmatpush1.msra.mxu0 0.0
    %682 = vmatprep.subr.mxu0 0.0
    %683 = vmatpush1.msra.mxu0 0.0
    %684 = vmatprep.subr.mxu0 0.0
    %685 = vmatpush1.msra.mxu0 0.0
    %686 = vmatprep.subr.mxu0 0.0
    %687 = vmatpush1.msra.mxu0 0.0
    %688 = vmatprep.subr.mxu0 0.0
    %689 = vmatpush1.msra.mxu0 0.0
    %690 = vmatprep.subr.mxu0 0.0
    %691 = vmatpush1.msra.mxu0 0.0
    %692 = vmatprep.subr.mxu0 0.0
    %693 = vmatpush1.msra.mxu0 0.0
    %694 = vmatprep.subr.mxu0 0.0
    %695 = vmatpush1.msra.mxu0 0.0
    %696 = vmatprep.subr.mxu0 0.0
    %697 = vmatpush1.msra.mxu0 0.0
    %698 = vmatprep.subr.mxu0 0.0
    %699 = vmatpush1.msra.mxu0 0.0
    %700 = vmatprep.subr.mxu0 0.0
    %701 = vmatpush1.msra.mxu0 0.0
    %702 = vmatprep.subr.mxu0 0.0
    %703 = vmatpush1.msra.mxu0 0.0
    %704 = vmatprep.subr.mxu0 0.0
    %705 = vmatpush1.msra.mxu0 0.0
    %706 = vmatprep.subr.mxu0 0.0
    %707 = vmatpush1.msra.mxu0 0.0
    %708 = vmatprep.subr.mxu0 0.0
    %709 = vmatpush1.msra.mxu0 0.0
    %710 = vmatprep.subr.mxu0 0.0
    %711 = vmatpush1.msra.mxu0 0.0
    %712 = vmatprep.subr.mxu0 0.0
    %713 = vmatpush1.msra.mxu0 0.0
    %714 = vmatprep.subr.mxu0 0.0
    %715 = vmatpush1.msra.mxu0 0.0
    %716 = vmatprep.subr.mxu0 0.0
    %717 = vmatpush1.msra.mxu0 0.0
    %718 = vmatprep.subr.mxu0 0.0
    %719 = vmatpush1.msra.mxu0 0.0
    %720 = vmatprep.subr.mxu0 0.0
    %721 = vmatpush1.msra.mxu0 0.0
    %722 = vmatprep.subr.mxu0 0.0
    %723 = vmatpush1.msra.mxu0 0.0
    %724 = vmatprep.subr.mxu0 0.0
    %725 = vmatpush1.msra.mxu0 0.0
    %726 = vmatprep.subr.mxu0 0.0
    %727 = vmatpush1.msra.mxu0 0.0
    %728 = vmatprep.subr.mxu0 0.0
    %729 = vmatpush1.msra.mxu0 0.0
    %730 = vmatprep.mubr.f32.mxu0 0.0
    %731 = vmatmul.mubr.f32.gmra.mrb[0].mxu0 %v97
    %v732 = vpop.f32.mrb[0].mxu0
    %v733 = vadd.f32 %v88, %v732
    %v734 = vpop.f32.mrb[0].mxu0
    %v735 = vadd.f32 %v88, %v734
    %736 = vmatprep.mubr.f32.mxu0 0.0
    %737 = vmatmul.mubr.f32.gmra.mrb[0].mxu0 %v100
    %v738 = vpop.f32.mrb[0].mxu0
    %v739 = vadd.f32 %v93, %v738
    %v740 = vpop.f32.mrb[0].mxu0
    %v741 = vadd.f32 %v93, %v740
    %742 = vdwg.mxu0
    %743 = vmatprep.subr.mxu0 %v637
    %744 = vmatpush1.msra.mxu0 %v636
    %745 = vmatprep.subr.mxu0 %v645
    %746 = vmatpush1.msra.mxu0 %v644
    %747 = vmatprep.subr.mxu0 %v653
    %748 = vmatpush1.msra.mxu0 %v652
    %749 = vmatprep.subr.mxu0 %v661
    %750 = vmatpush1.msra.mxu0 %v660
    %751 = vmatprep.subr.mxu0 0.0
    %752 = vmatpush1.msra.mxu0 0.0
    %753 = vmatprep.subr.mxu0 0.0
    %754 = vmatpush1.msra.mxu0 0.0
    %755 = vmatprep.subr.mxu0 0.0
    %756 = vmatpush1.msra.mxu0 0.0
    %757 = vmatprep.subr.mxu0 0.0
    %758 = vmatpush1.msra.mxu0 0.0
    %759 = vmatprep.subr.mxu0 0.0
    %760 = vmatpush1.msra.mxu0 0.0
    %761 = vmatprep.subr.mxu0 0.0
    %762 = vmatpush1.msra.mxu0 0.0
    %763 = vmatprep.subr.mxu0 0.0
    %764 = vmatpush1.msra.mxu0 0.0
    %765 = vmatprep.subr.mxu0 0.0
    %766 = vmatpush1.msra.mxu0 0.0
    %767 = vmatprep.subr.mxu0 0.0
    %768 = vmatpush1.msra.mxu0 0.0
    %769 = vmatprep.subr.mxu0 0.0
    %770 = vmatpush1.msra.mxu0 0.0
    %771 = vmatprep.subr.mxu0 0.0
    %772 = vmatpush1.msra.mxu0 0.0
    %773 = vmatprep.subr.mxu0 0.0
    %774 = vmatpush1.msra.mxu0 0.0
    %775 = vmatprep.subr.mxu0 0.0
    %776 = vmatpush1.msra.mxu0 0.0
    %777 = vmatprep.subr.mxu0 0.0
    %778 = vmatpush1.msra.mxu0 0.0
    %779 = vmatprep.subr.mxu0 0.0
    %780 = vmatpush1.msra.mxu0 0.0
    %781 = vmatprep.subr.mxu0 0.0
    %782 = vmatpush1.msra.mxu0 0.0
    %783 = vmatprep.subr.mxu0 0.0
    %784 = vmatpush1.msra.mxu0 0.0
    %785 = vmatprep.subr.mxu0 0.0
    %786 = vmatpush1.msra.mxu0 0.0
    %787 = vmatprep.subr.mxu0 0.0
    %788 = vmatpush1.msra.mxu0 0.0
    %789 = vmatprep.subr.mxu0 0.0
    %790 = vmatpush1.msra.mxu0 0.0
    %791 = vmatprep.subr.mxu0 0.0
    %792 = vmatpush1.msra.mxu0 0.0
    %793 = vmatprep.subr.mxu0 0.0
    %794 = vmatpush1.msra.mxu0 0.0
    %795 = vmatprep.subr.mxu0 0.0
    %796 = vmatpush1.msra.mxu0 0.0
    %797 = vmatprep.subr.mxu0 0.0
    %798 = vmatpush1.msra.mxu0 0.0
    %799 = vmatprep.subr.mxu0 0.0
    %800 = vmatpush1.msra.mxu0 0.0
    %801 = vmatprep.subr.mxu0 0.0
    %802 = vmatpush1.msra.mxu0 0.0
    %803 = vmatprep.subr.mxu0 0.0
    %804 = vmatpush1.msra.mxu0 0.0
    %805 = vmatprep.subr.mxu0 0.0
    %806 = vmatpush1.msra.mxu0 0.0
    %807 = vmatprep.mubr.f32.mxu0 0.0
    %808 = vmatmul.mubr.f32.gmra.mrb[0].mxu0 %v97
    %v809 = vpop.f32.mrb[0].mxu0
    %v810 = vadd.f32 %v88, %v809
    %v811 = vpop.f32.mrb[0].mxu0
    %v812 = vadd.f32 %v88, %v811
    %813 = vmatprep.mubr.f32.mxu0 0.0
    %814 = vmatmul.mubr.f32.gmra.mrb[0].mxu0 %v100
    %v815 = vpop.f32.mrb[0].mxu0
    %v816 = vadd.f32 %v93, %v815
    %v817 = vpop.f32.mrb[0].mxu0
    %v818 = vadd.f32 %v93, %v817
    %819 = vdwg.mxu0
    %820 = vmatprep.subr.mxu0 %v639
    %821 = vmatpush1.msra.mxu0 %v638
    %822 = vmatprep.subr.mxu0 %v647
    %823 = vmatpush1.msra.mxu0 %v646
    %824 = vmatprep.subr.mxu0 %v655
    %825 = vmatpush1.msra.mxu0 %v654
    %826 = vmatprep.subr.mxu0 %v663
    %827 = vmatpush1.msra.mxu0 %v662
    %828 = vmatprep.subr.mxu0 0.0
    %829 = vmatpush1.msra.mxu0 0.0
    %830 = vmatprep.subr.mxu0 0.0
    %831 = vmatpush1.msra.mxu0 0.0
    %832 = vmatprep.subr.mxu0 0.0
    %833 = vmatpush1.msra.mxu0 0.0
    %834 = vmatprep.subr.mxu0 0.0
    %835 = vmatpush1.msra.mxu0 0.0
    %836 = vmatprep.subr.mxu0 0.0
    %837 = vmatpush1.msra.mxu0 0.0
    %838 = vmatprep.subr.mxu0 0.0
    %839 = vmatpush1.msra.mxu0 0.0
    %840 = vmatprep.subr.mxu0 0.0
    %841 = vmatpush1.msra.mxu0 0.0
    %842 = vmatprep.subr.mxu0 0.0
    %843 = vmatpush1.msra.mxu0 0.0
    %844 = vmatprep.subr.mxu0 0.0
    %845 = vmatpush1.msra.mxu0 0.0
    %846 = vmatprep.subr.mxu0 0.0
    %847 = vmatpush1.msra.mxu0 0.0
    %848 = vmatprep.subr.mxu0 0.0
    %849 = vmatpush1.msra.mxu0 0.0
    %850 = vmatprep.subr.mxu0 0.0
    %851 = vmatpush1.msra.mxu0 0.0
    %852 = vmatprep.subr.mxu0 0.0
    %853 = vmatpush1.msra.mxu0 0.0
    %854 = vmatprep.subr.mxu0 0.0
    %855 = vmatpush1.msra.mxu0 0.0
    %856 = vmatprep.subr.mxu0 0.0
    %857 = vmatpush1.msra.mxu0 0.0
    %858 = vmatprep.subr.mxu0 0.0
    %859 = vmatpush1.msra.mxu0 0.0
    %860 = vmatprep.subr.mxu0 0.0
    %861 = vmatpush1.msra.mxu0 0.0
    %862 = vmatprep.subr.mxu0 0.0
    %863 = vmatpush1.msra.mxu0 0.0
    %864 = vmatprep.subr.mxu0 0.0
    %865 = vmatpush1.msra.mxu0 0.0
    %866 = vmatprep.subr.mxu0 0.0
    %867 = vmatpush1.msra.mxu0 0.0
    %868 = vmatprep.subr.mxu0 0.0
    %869 = vmatpush1.msra.mxu0 0.0
    %870 = vmatprep.subr.mxu0 0.0
    %871 = vmatpush1.msra.mxu0 0.0
    %872 = vmatprep.subr.mxu0 0.0
    %873 = vmatpush1.msra.mxu0 0.0
    %874 = vmatprep.subr.mxu0 0.0
    %875 = vmatpush1.msra.mxu0 0.0
    %876 = vmatprep.subr.mxu0 0.0
    %877 = vmatpush1.msra.mxu0 0.0
    %878 = vmatprep.subr.mxu0 0.0
    %879 = vmatpush1.msra.mxu0 0.0
    %880 = vmatprep.subr.mxu0 0.0
    %881 = vmatpush1.msra.mxu0 0.0
    %882 = vmatprep.subr.mxu0 0.0
    %883 = vmatpush1.msra.mxu0 0.0
    %884 = vmatprep.mubr.f32.mxu0 0.0
    %885 = vmatmul.mubr.f32.gmra.mrb[0].mxu0 %v97
    %v886 = vpop.f32.mrb[0].mxu0
    %v887 = vadd.f32 %v88, %v886
    %v888 = vpop.f32.mrb[0].mxu0
    %v889 = vadd.f32 %v88, %v888
    %890 = vmatprep.mubr.f32.mxu0 0.0
    %891 = vmatmul.mubr.f32.gmra.mrb[0].mxu0 %v100
    %v892 = vpop.f32.mrb[0].mxu0
    %v893 = vadd.f32 %v93, %v892
    %v894 = vpop.f32.mrb[0].mxu0
    %v895 = vadd.f32 %v93, %v894
    %896 = vdwg.mxu0
    %897 = vmatprep.subr.mxu0 %v641
    %898 = vmatpush1.msra.mxu0 %v640
    %899 = vmatprep.subr.mxu0 %v649
    %900 = vmatpush1.msra.mxu0 %v648
    %901 = vmatprep.subr.mxu0 %v657
    %902 = vmatpush1.msra.mxu0 %v656
    %903 = vmatprep.subr.mxu0 %v665
    %904 = vmatpush1.msra.mxu0 %v664
    %905 = vmatprep.subr.mxu0 0.0
    %906 = vmatpush1.msra.mxu0 0.0
    %907 = vmatprep.subr.mxu0 0.0
    %908 = vmatpush1.msra.mxu0 0.0
    %909 = vmatprep.subr.mxu0 0.0
    %910 = vmatpush1.msra.mxu0 0.0
    %911 = vmatprep.subr.mxu0 0.0
    %912 = vmatpush1.msra.mxu0 0.0
    %913 = vmatprep.subr.mxu0 0.0
    %914 = vmatpush1.msra.mxu0 0.0
    %915 = vmatprep.subr.mxu0 0.0
    %916 = vmatpush1.msra.mxu0 0.0
    %917 = vmatprep.subr.mxu0 0.0
    %918 = vmatpush1.msra.mxu0 0.0
    %919 = vmatprep.subr.mxu0 0.0
    %920 = vmatpush1.msra.mxu0 0.0
    %921 = vmatprep.subr.mxu0 0.0
    %922 = vmatpush1.msra.mxu0 0.0
    %923 = vmatprep.subr.mxu0 0.0
    %924 = vmatpush1.msra.mxu0 0.0
    %925 = vmatprep.subr.mxu0 0.0
    %926 = vmatpush1.msra.mxu0 0.0
    %927 = vmatprep.subr.mxu0 0.0
    %928 = vmatpush1.msra.mxu0 0.0
    %929 = vmatprep.subr.mxu0 0.0
    %930 = vmatpush1.msra.mxu0 0.0
    %931 = vmatprep.subr.mxu0 0.0
    %932 = vmatpush1.msra.mxu0 0.0
    %933 = vmatprep.subr.mxu0 0.0
    %934 = vmatpush1.msra.mxu0 0.0
    %935 = vmatprep.subr.mxu0 0.0
    %936 = vmatpush1.msra.mxu0 0.0
    %937 = vmatprep.subr.mxu0 0.0
    %938 = vmatpush1.msra.mxu0 0.0
    %939 = vmatprep.subr.mxu0 0.0
    %940 = vmatpush1.msra.mxu0 0.0
    %941 = vmatprep.subr.mxu0 0.0
    %942 = vmatpush1.msra.mxu0 0.0
    %943 = vmatprep.subr.mxu0 0.0
    %944 = vmatpush1.msra.mxu0 0.0
    %945 = vmatprep.subr.mxu0 0.0
    %946 = vmatpush1.msra.mxu0 0.0
    %947 = vmatprep.subr.mxu0 0.0
    %948 = vmatpush1.msra.mxu0 0.0
    %949 = vmatprep.subr.mxu0 0.0
    %950 = vmatpush1.msra.mxu0 0.0
    %951 = vmatprep.subr.mxu0 0.0
    %952 = vmatpush1.msra.mxu0 0.0
    %953 = vmatprep.subr.mxu0 0.0
    %954 = vmatpush1.msra.mxu0 0.0
    %955 = vmatprep.subr.mxu0 0.0
    %956 = vmatpush1.msra.mxu0 0.0
    %957 = vmatprep.subr.mxu0 0.0
    %958 = vmatpush1.msra.mxu0 0.0
    %959 = vmatprep.subr.mxu0 0.0
    %960 = vmatpush1.msra.mxu0 0.0
    %961 = vmatprep.mubr.f32.mxu0 0.0
    %962 = vmatmul.mubr.f32.gmra.mrb[0].mxu0 %v97
    %v963 = vpop.f32.mrb[0].mxu0
    %v964 = vadd.f32 %v88, %v963
    %v965 = vpop.f32.mrb[0].mxu0
    %v966 = vadd.f32 %v88, %v965
    %967 = vmatprep.mubr.f32.mxu0 0.0
    %968 = vmatmul.mubr.f32.gmra.mrb[0].mxu0 %v100
    %v969 = vpop.f32.mrb[0].mxu0
    %v970 = vadd.f32 %v93, %v969
    %v971 = vpop.f32.mrb[0].mxu0
    %v972 = vadd.f32 %v93, %v971
    %973 = vdwg.mxu0
    %v974 = vtanh.pop %v733
    %v975 = vtanh.pop %v735
    %v976 = vtanh.pop %v810
    %v977 = vtanh.pop %v812
    %v978 = vtanh.pop %v887
    %v979 = vtanh.pop %v889
    %v980 = vtanh.pop %v964
    %v981 = vtanh.pop %v966
    %v982 = vtanh.pop %v739
    %v983 = vtanh.pop %v741
    %v984 = vtanh.pop %v816
    %v985 = vtanh.pop %v818
    %v986 = vtanh.pop %v893
    %v987 = vtanh.pop %v895
    %v988 = vtanh.pop %v970
    %v989 = vtanh.pop %v972
    %990 = vset.pattern.permute.xlu0 1
    %991 = vperm.xlu0 %990, %v39
    %v992 = vpop.permute.xlu0 %991
    %994 = vset.pattern.permute.xlu0 1
    %995 = vperm.xlu0 %994, %v40
    %v996 = vpop.permute.xlu0 %995
    %v998 = vmul.f32 %v974, %v992
    %v999 = vmul.f32 %v975, %v992
    %v1000 = vmul.f32 %v976, %v992
    %v1001 = vmul.f32 %v977, %v992
    %v1002 = vmul.f32 %v978, %v992
    %v1003 = vmul.f32 %v979, %v992
    %v1004 = vmul.f32 %v980, %v992
    %v1005 = vmul.f32 %v981, %v992
    %v1006 = vmul.f32 %v982, %v996
    %v1007 = vmul.f32 %v983, %v996
    %v1008 = vmul.f32 %v984, %v996
    %v1009 = vmul.f32 %v985, %v996
    %v1010 = vmul.f32 %v986, %v996
    %v1011 = vmul.f32 %v987, %v996
    %v1012 = vmul.f32 %v988, %v996
    %v1013 = vmul.f32 %v989, %v996
    %v1014 = vadd.f32 %v998, %v1006
    %v1015 = vrot.slane %v1014, 4
    %v1016 = vadd.f32 %v1014, %v1015
    %v1017 = vrot.slane %v1016, 2
    %v1018 = vadd.f32 %v1016, %v1017
    %v1019 = vrot.slane %v1018, 1
    %v1020 = vadd.f32 %v1018, %v1019
    %v1021 = vadd.f32 %v999, %v1007
    %v1022 = vrot.slane %v1021, 4
    %v1023 = vadd.f32 %v1021, %v1022
    %v1024 = vrot.slane %v1023, 2
    %v1025 = vadd.f32 %v1023, %v1024
    %v1026 = vrot.slane %v1025, 1
    %v1027 = vadd.f32 %v1025, %v1026
    %v1028 = vadd.f32 %v1000, %v1008
    %v1029 = vrot.slane %v1028, 4
    %v1030 = vadd.f32 %v1028, %v1029
    %v1031 = vrot.slane %v1030, 2
    %v1032 = vadd.f32 %v1030, %v1031
    %v1033 = vrot.slane %v1032, 1
    %v1034 = vadd.f32 %v1032, %v1033
    %v1035 = vadd.f32 %v1001, %v1009
    %v1036 = vrot.slane %v1035, 4
    %v1037 = vadd.f32 %v1035, %v1036
    %v1038 = vrot.slane %v1037, 2
    %v1039 = vadd.f32 %v1037, %v1038
    %v1040 = vrot.slane %v1039, 1
    %v1041 = vadd.f32 %v1039, %v1040
    %v1042 = vadd.f32 %v1002, %v1010
    %v1043 = vrot.slane %v1042, 4
    %v1044 = vadd.f32 %v1042, %v1043
    %v1045 = vrot.slane %v1044, 2
    %v1046 = vadd.f32 %v1044, %v1045
    %v1047 = vrot.slane %v1046, 1
    %v1048 = vadd.f32 %v1046, %v1047
    %v1049 = vadd.f32 %v1003, %v1011
    %v1050 = vrot.slane %v1049, 4
    %v1051 = vadd.f32 %v1049, %v1050
    %v1052 = vrot.slane %v1051, 2
    %v1053 = vadd.f32 %v1051, %v1052
    %v1054 = vrot.slane %v1053, 1
    %v1055 = vadd.f32 %v1053, %v1054
    %v1056 = vadd.f32 %v1004, %v1012
    %v1057 = vrot.slane %v1056, 4
    %v1058 = vadd.f32 %v1056, %v1057
    %v1059 = vrot.slane %v1058, 2
    %v1060 = vadd.f32 %v1058, %v1059
    %v1061 = vrot.slane %v1060, 1
    %v1062 = vadd.f32 %v1060, %v1061
    %v1063 = vadd.f32 %v1005, %v1013
    %v1064 = vrot.slane %v1063, 4
    %v1065 = vadd.f32 %v1063, %v1064
    %v1066 = vrot.slane %v1065, 2
    %v1067 = vadd.f32 %v1065, %v1066
    %v1068 = vrot.slane %v1067, 1
    %v1069 = vadd.f32 %v1067, %v1068
    %v1070 = vmul.f32 %v974, %v974
    %v1071 = vmul.f32 %v975, %v975
    %v1072 = vmul.f32 %v976, %v976
    %v1073 = vmul.f32 %v977, %v977
    %v1074 = vmul.f32 %v978, %v978
    %v1075 = vmul.f32 %v979, %v979
    %v1076 = vmul.f32 %v980, %v980
    %v1077 = vmul.f32 %v981, %v981
    %v1078 = vmul.f32 %v982, %v982
    %v1079 = vmul.f32 %v983, %v983
    %v1080 = vmul.f32 %v984, %v984
    %v1081 = vmul.f32 %v985, %v985
    %v1082 = vmul.f32 %v986, %v986
    %v1083 = vmul.f32 %v987, %v987
    %v1084 = vmul.f32 %v988, %v988
    %v1085 = vmul.f32 %v989, %v989
    %v1086 = vadd.f32 %v1070, %v1078
    %v1087 = vrot.slane %v1086, 4
    %v1088 = vadd.f32 %v1086, %v1087
    %v1089 = vrot.slane %v1088, 2
    %v1090 = vadd.f32 %v1088, %v1089
    %v1091 = vrot.slane %v1090, 1
    %v1092 = vadd.f32 %v1090, %v1091
    %v1093 = vadd.f32 %v1071, %v1079
    %v1094 = vrot.slane %v1093, 4
    %v1095 = vadd.f32 %v1093, %v1094
    %v1096 = vrot.slane %v1095, 2
    %v1097 = vadd.f32 %v1095, %v1096
    %v1098 = vrot.slane %v1097, 1
    %v1099 = vadd.f32 %v1097, %v1098
    %v1100 = vadd.f32 %v1072, %v1080
    %v1101 = vrot.slane %v1100, 4
    %v1102 = vadd.f32 %v1100, %v1101
    %v1103 = vrot.slane %v1102, 2
    %v1104 = vadd.f32 %v1102, %v1103
    %v1105 = vrot.slane %v1104, 1
    %v1106 = vadd.f32 %v1104, %v1105
    %v1107 = vadd.f32 %v1073, %v1081
    %v1108 = vrot.slane %v1107, 4
    %v1109 = vadd.f32 %v1107, %v1108
    %v1110 = vrot.slane %v1109, 2
    %v1111 = vadd.f32 %v1109, %v1110
    %v1112 = vrot.slane %v1111, 1
    %v1113 = vadd.f32 %v1111, %v1112
    %v1114 = vadd.f32 %v1074, %v1082
    %v1115 = vrot.slane %v1114, 4
    %v1116 = vadd.f32 %v1114, %v1115
    %v1117 = vrot.slane %v1116, 2
    %v1118 = vadd.f32 %v1116, %v1117
    %v1119 = vrot.slane %v1118, 1
    %v1120 = vadd.f32 %v1118, %v1119
    %v1121 = vadd.f32 %v1075, %v1083
    %v1122 = vrot.slane %v1121, 4
    %v1123 = vadd.f32 %v1121, %v1122
    %v1124 = vrot.slane %v1123, 2
    %v1125 = vadd.f32 %v1123, %v1124
    %v1126 = vrot.slane %v1125, 1
    %v1127 = vadd.f32 %v1125, %v1126
    %v1128 = vadd.f32 %v1076, %v1084
    %v1129 = vrot.slane %v1128, 4
    %v1130 = vadd.f32 %v1128, %v1129
    %v1131 = vrot.slane %v1130, 2
    %v1132 = vadd.f32 %v1130, %v1131
    %v1133 = vrot.slane %v1132, 1
    %v1134 = vadd.f32 %v1132, %v1133
    %v1135 = vadd.f32 %v1077, %v1085
    %v1136 = vrot.slane %v1135, 4
    %v1137 = vadd.f32 %v1135, %v1136
    %v1138 = vrot.slane %v1137, 2
    %v1139 = vadd.f32 %v1137, %v1138
    %v1140 = vrot.slane %v1139, 1
    %v1141 = vadd.f32 %v1139, %v1140
    %1142 = vset.pattern.permute.xlu0 1
    %1143 = vperm.xlu0 %1142, %v52
    %v1144 = vpop.permute.xlu0 %1143
    %v1146 = vmul.f32 %v1092, %v1144
    %v1147 = vmul.f32 %v1099, %v1144
    %v1148 = vmul.f32 %v1106, %v1144
    %v1149 = vmul.f32 %v1113, %v1144
    %v1150 = vmul.f32 %v1120, %v1144
    %v1151 = vmul.f32 %v1127, %v1144
    %v1152 = vmul.f32 %v1134, %v1144
    %v1153 = vmul.f32 %v1141, %v1144
    %v1154 = vrsqrt.pop %v1146
    %v1155 = vrsqrt.pop %v1147
    %v1156 = vrsqrt.pop %v1148
    %v1157 = vrsqrt.pop %v1149
    %v1158 = vrsqrt.pop %v1150
    %v1159 = vrsqrt.pop %v1151
    %v1160 = vrsqrt.pop %v1152
    %v1161 = vrsqrt.pop %v1153
    %v1162 = vmin.f32 %v1154, 1e+08
    %v1163 = vmin.f32 %v1155, 1e+08
    %v1164 = vmin.f32 %v1156, 1e+08
    %v1165 = vmin.f32 %v1157, 1e+08
    %v1166 = vmin.f32 %v1158, 1e+08
    %v1167 = vmin.f32 %v1159, 1e+08
    %v1168 = vmin.f32 %v1160, 1e+08
    %v1169 = vmin.f32 %v1161, 1e+08
    %v1170 = vmul.f32 %v1020, %v1162
    %v1171 = vmul.f32 %v1027, %v1163
    %v1172 = vmul.f32 %v1034, %v1164
    %v1173 = vmul.f32 %v1041, %v1165
    %v1174 = vmul.f32 %v1048, %v1166
    %v1175 = vmul.f32 %v1055, %v1167
    %v1176 = vmul.f32 %v1062, %v1168
    %v1177 = vmul.f32 %v1069, %v1169
    %v1178 = vmul.f32 %v1170, 1.442695
    %v1179 = vpow.pop %v1178
    %v1180 = vmul.f32 %v1171, 1.442695
    %v1181 = vpow.pop %v1180
    %v1182 = vmul.f32 %v1172, 1.442695
    %v1183 = vpow.pop %v1182
    %v1184 = vmul.f32 %v1173, 1.442695
    %v1185 = vpow.pop %v1184
    %v1186 = vmul.f32 %v1174, 1.442695
    %v1187 = vpow.pop %v1186
    %v1188 = vmul.f32 %v1175, 1.442695
    %v1189 = vpow.pop %v1188
    %v1190 = vmul.f32 %v1176, 1.442695
    %v1191 = vpow.pop %v1190
    %v1192 = vmul.f32 %v1177, 1.442695
    %v1193 = vpow.pop %v1192
    %s1194 = scalar_lea.vmem [#allocation2], 512
    %v1195 = vld [vmem:[%s1194] sm:$0xff]
    %v1196 = vld [vmem:[%s1194 + $0x8] sm:$0xff]
    %v1197 = vld [vmem:[%s1194 + $0x10] sm:$0xff]
    %v1198 = vld [vmem:[%s1194 + $0x18] sm:$0xff]
    %v1199 = vld [vmem:[%s1194 + $0x20] sm:$0xff]
    %v1200 = vld [vmem:[%s1194 + $0x28] sm:$0xff]
    %v1201 = vld [vmem:[%s1194 + $0x30] sm:$0xff]
    %v1202 = vld [vmem:[%s1194 + $0x38] sm:$0xff]
    %v1203 = vld [vmem:[%s1194 + $0x40] sm:$0xff]
    %v1204 = vld [vmem:[%s1194 + $0x48] sm:$0xff]
    %v1205 = vld [vmem:[%s1194 + $0x50] sm:$0xff]
    %v1206 = vld [vmem:[%s1194 + $0x58] sm:$0xff]
    %v1207 = vld [vmem:[%s1194 + $0x60] sm:$0xff]
    %v1208 = vld [vmem:[%s1194 + $0x68] sm:$0xff]
    %v1209 = vld [vmem:[%s1194 + $0x70] sm:$0xff]
    %v1210 = vld [vmem:[%s1194 + $0x78] sm:$0xff]
    %v1211 = vld [vmem:[%s1194 + $0x80] sm:$0xff]
    %v1212 = vld [vmem:[%s1194 + $0x88] sm:$0xff]
    %v1213 = vld [vmem:[%s1194 + $0x90] sm:$0xff]
    %v1214 = vld [vmem:[%s1194 + $0x98] sm:$0xff]
    %v1215 = vld [vmem:[%s1194 + $0xa0] sm:$0xff]
    %v1216 = vld [vmem:[%s1194 + $0xa8] sm:$0xff]
    %v1217 = vld [vmem:[%s1194 + $0xb0] sm:$0xff]
    %v1218 = vld [vmem:[%s1194 + $0xb8] sm:$0xff]
    %v1219 = vld [vmem:[%s1194 + $0xc0] sm:$0xff]
    %v1220 = vld [vmem:[%s1194 + $0xc8] sm:$0xff]
    %v1221 = vld [vmem:[%s1194 + $0xd0] sm:$0xff]
    %v1222 = vld [vmem:[%s1194 + $0xd8] sm:$0xff]
    %v1223 = vld [vmem:[%s1194 + $0xe0] sm:$0xff]
    %v1224 = vld [vmem:[%s1194 + $0xe8] sm:$0xff]
    %v1225 = vld [vmem:[%s1194 + $0xf0] sm:$0xff]
    %v1226 = vld [vmem:[%s1194 + $0xf8] sm:$0xff]
    %1227 = vmatprep.subr.mxu0 %v1196
    %1228 = vmatpush1.msra.mxu0 %v1195
    %1229 = vmatprep.subr.mxu0 %v1204
    %1230 = vmatpush1.msra.mxu0 %v1203
    %1231 = vmatprep.subr.mxu0 %v1212
    %1232 = vmatpush1.msra.mxu0 %v1211
    %1233 = vmatprep.subr.mxu0 %v1220
    %1234 = vmatpush1.msra.mxu0 %v1219
    %1235 = vmatprep.subr.mxu0 0.0
    %1236 = vmatpush1.msra.mxu0 0.0
    %1237 = vmatprep.subr.mxu0 0.0
    %1238 = vmatpush1.msra.mxu0 0.0
    %1239 = vmatprep.subr.mxu0 0.0
    %1240 = vmatpush1.msra.mxu0 0.0
    %1241 = vmatprep.subr.mxu0 0.0
    %1242 = vmatpush1.msra.mxu0 0.0
    %1243 = vmatprep.subr.mxu0 0.0
    %1244 = vmatpush1.msra.mxu0 0.0
    %1245 = vmatprep.subr.mxu0 0.0
    %1246 = vmatpush1.msra.mxu0 0.0
    %1247 = vmatprep.subr.mxu0 0.0
    %1248 = vmatpush1.msra.mxu0 0.0
    %1249 = vmatprep.subr.mxu0 0.0
    %1250 = vmatpush1.msra.mxu0 0.0
    %1251 = vmatprep.subr.mxu0 0.0
    %1252 = vmatpush1.msra.mxu0 0.0
    %1253 = vmatprep.subr.mxu0 0.0
    %1254 = vmatpush1.msra.mxu0 0.0
    %1255 = vmatprep.subr.mxu0 0.0
    %1256 = vmatpush1.msra.mxu0 0.0
    %1257 = vmatprep.subr.mxu0 0.0
    %1258 = vmatpush1.msra.mxu0 0.0
    %1259 = vmatprep.subr.mxu0 0.0
    %1260 = vmatpush1.msra.mxu0 0.0
    %1261 = vmatprep.subr.mxu0 0.0
    %1262 = vmatpush1.msra.mxu0 0.0
    %1263 = vmatprep.subr.mxu0 0.0
    %1264 = vmatpush1.msra.mxu0 0.0
    %1265 = vmatprep.subr.mxu0 0.0
    %1266 = vmatpush1.msra.mxu0 0.0
    %1267 = vmatprep.subr.mxu0 0.0
    %1268 = vmatpush1.msra.mxu0 0.0
    %1269 = vmatprep.subr.mxu0 0.0
    %1270 = vmatpush1.msra.mxu0 0.0
    %1271 = vmatprep.subr.mxu0 0.0
    %1272 = vmatpush1.msra.mxu0 0.0
    %1273 = vmatprep.subr.mxu0 0.0
    %1274 = vmatpush1.msra.mxu0 0.0
    %1275 = vmatprep.subr.mxu0 0.0
    %1276 = vmatpush1.msra.mxu0 0.0
    %1277 = vmatprep.subr.mxu0 0.0
    %1278 = vmatpush1.msra.mxu0 0.0
    %1279 = vmatprep.subr.mxu0 0.0
    %1280 = vmatpush1.msra.mxu0 0.0
    %1281 = vmatprep.subr.mxu0 0.0
    %1282 = vmatpush1.msra.mxu0 0.0
    %1283 = vmatprep.subr.mxu0 0.0
    %1284 = vmatpush1.msra.mxu0 0.0
    %1285 = vmatprep.subr.mxu0 0.0
    %1286 = vmatpush1.msra.mxu0 0.0
    %1287 = vmatprep.subr.mxu0 0.0
    %1288 = vmatpush1.msra.mxu0 0.0
    %1289 = vmatprep.subr.mxu0 0.0
    %1290 = vmatpush1.msra.mxu0 0.0
    %1291 = vmatprep.mubr.f32.mxu0 0.0
    %1292 = vmatmul.mubr.f32.gmra.mrb[0].mxu0 %v97
    %v1293 = vpop.f32.mrb[0].mxu0
    %v1294 = vadd.f32 %v88, %v1293
    %v1295 = vpop.f32.mrb[0].mxu0
    %v1296 = vadd.f32 %v88, %v1295
    %1297 = vmatprep.mubr.f32.mxu0 0.0
    %1298 = vmatmul.mubr.f32.gmra.mrb[0].mxu0 %v100
    %v1299 = vpop.f32.mrb[0].mxu0
    %v1300 = vadd.f32 %v93, %v1299
    %v1301 = vpop.f32.mrb[0].mxu0
    %v1302 = vadd.f32 %v93, %v1301
    %1303 = vdwg.mxu0
    %1304 = vmatprep.subr.mxu0 %v1198
    %1305 = vmatpush1.msra.mxu0 %v1197
    %1306 = vmatprep.subr.mxu0 %v1206
    %1307 = vmatpush1.msra.mxu0 %v1205
    %1308 = vmatprep.subr.mxu0 %v1214
    %1309 = vmatpush1.msra.mxu0 %v1213
    %1310 = vmatprep.subr.mxu0 %v1222
    %1311 = vmatpush1.msra.mxu0 %v1221
    %1312 = vmatprep.subr.mxu0 0.0
    %1313 = vmatpush1.msra.mxu0 0.0
    %1314 = vmatprep.subr.mxu0 0.0
    %1315 = vmatpush1.msra.mxu0 0.0
    %1316 = vmatprep.subr.mxu0 0.0
    %1317 = vmatpush1.msra.mxu0 0.0
    %1318 = vmatprep.subr.mxu0 0.0
    %1319 = vmatpush1.msra.mxu0 0.0
    %1320 = vmatprep.subr.mxu0 0.0
    %1321 = vmatpush1.msra.mxu0 0.0
    %1322 = vmatprep.subr.mxu0 0.0
    %1323 = vmatpush1.msra.mxu0 0.0
    %1324 = vmatprep.subr.mxu0 0.0
    %1325 = vmatpush1.msra.mxu0 0.0
    %1326 = vmatprep.subr.mxu0 0.0
    %1327 = vmatpush1.msra.mxu0 0.0
    %1328 = vmatprep.subr.mxu0 0.0
    %1329 = vmatpush1.msra.mxu0 0.0
    %1330 = vmatprep.subr.mxu0 0.0
    %1331 = vmatpush1.msra.mxu0 0.0
    %1332 = vmatprep.subr.mxu0 0.0
    %1333 = vmatpush1.msra.mxu0 0.0
    %1334 = vmatprep.subr.mxu0 0.0
    %1335 = vmatpush1.msra.mxu0 0.0
    %1336 = vmatprep.subr.mxu0 0.0
    %1337 = vmatpush1.msra.mxu0 0.0
    %1338 = vmatprep.subr.mxu0 0.0
    %1339 = vmatpush1.msra.mxu0 0.0
    %1340 = vmatprep.subr.mxu0 0.0
    %1341 = vmatpush1.msra.mxu0 0.0
    %1342 = vmatprep.subr.mxu0 0.0
    %1343 = vmatpush1.msra.mxu0 0.0
    %1344 = vmatprep.subr.mxu0 0.0
    %1345 = vmatpush1.msra.mxu0 0.0
    %1346 = vmatprep.subr.mxu0 0.0
    %1347 = vmatpush1.msra.mxu0 0.0
    %1348 = vmatprep.subr.mxu0 0.0
    %1349 = vmatpush1.msra.mxu0 0.0
    %1350 = vmatprep.subr.mxu0 0.0
    %1351 = vmatpush1.msra.mxu0 0.0
    %1352 = vmatprep.subr.mxu0 0.0
    %1353 = vmatpush1.msra.mxu0 0.0
    %1354 = vmatprep.subr.mxu0 0.0
    %1355 = vmatpush1.msra.mxu0 0.0
    %1356 = vmatprep.subr.mxu0 0.0
    %1357 = vmatpush1.msra.mxu0 0.0
    %1358 = vmatprep.subr.mxu0 0.0
    %1359 = vmatpush1.msra.mxu0 0.0
    %1360 = vmatprep.subr.mxu0 0.0
    %1361 = vmatpush1.msra.mxu0 0.0
    %1362 = vmatprep.subr.mxu0 0.0
    %1363 = vmatpush1.msra.mxu0 0.0
    %1364 = vmatprep.subr.mxu0 0.0
    %1365 = vmatpush1.msra.mxu0 0.0
    %1366 = vmatprep.subr.mxu0 0.0
    %1367 = vmatpush1.msra.mxu0 0.0
    %1368 = vmatprep.mubr.f32.mxu0 0.0
    %1369 = vmatmul.mubr.f32.gmra.mrb[0].mxu0 %v97
    %v1370 = vpop.f32.mrb[0].mxu0
    %v1371 = vadd.f32 %v88, %v1370
    %v1372 = vpop.f32.mrb[0].mxu0
    %v1373 = vadd.f32 %v88, %v1372
    %1374 = vmatprep.mubr.f32.mxu0 0.0
    %1375 = vmatmul.mubr.f32.gmra.mrb[0].mxu0 %v100
    %v1376 = vpop.f32.mrb[0].mxu0
    %v1377 = vadd.f32 %v93, %v1376
    %v1378 = vpop.f32.mrb[0].mxu0
    %v1379 = vadd.f32 %v93, %v1378
    %1380 = vdwg.mxu0
    %1381 = vmatprep.subr.mxu0 %v1200
    %1382 = vmatpush1.msra.mxu0 %v1199
    %1383 = vmatprep.subr.mxu0 %v1208
    %1384 = vmatpush1.msra.mxu0 %v1207
    %1385 = vmatprep.subr.mxu0 %v1216
    %1386 = vmatpush1.msra.mxu0 %v1215
    %1387 = vmatprep.subr.mxu0 %v1224
    %1388 = vmatpush1.msra.mxu0 %v1223
    %1389 = vmatprep.subr.mxu0 0.0
    %1390 = vmatpush1.msra.mxu0 0.0
    %1391 = vmatprep.subr.mxu0 0.0
    %1392 = vmatpush1.msra.mxu0 0.0
    %1393 = vmatprep.subr.mxu0 0.0
    %1394 = vmatpush1.msra.mxu0 0.0
    %1395 = vmatprep.subr.mxu0 0.0
    %1396 = vmatpush1.msra.mxu0 0.0
    %1397 = vmatprep.subr.mxu0 0.0
    %1398 = vmatpush1.msra.mxu0 0.0
    %1399 = vmatprep.subr.mxu0 0.0
    %1400 = vmatpush1.msra.mxu0 0.0
    %1401 = vmatprep.subr.mxu0 0.0
    %1402 = vmatpush1.msra.mxu0 0.0
    %1403 = vmatprep.subr.mxu0 0.0
    %1404 = vmatpush1.msra.mxu0 0.0
    %1405 = vmatprep.subr.mxu0 0.0
    %1406 = vmatpush1.msra.mxu0 0.0
    %1407 = vmatprep.subr.mxu0 0.0
    %1408 = vmatpush1.msra.mxu0 0.0
    %1409 = vmatprep.subr.mxu0 0.0
    %1410 = vmatpush1.msra.mxu0 0.0
    %1411 = vmatprep.subr.mxu0 0.0
    %1412 = vmatpush1.msra.mxu0 0.0
    %1413 = vmatprep.subr.mxu0 0.0
    %1414 = vmatpush1.msra.mxu0 0.0
    %1415 = vmatprep.subr.mxu0 0.0
    %1416 = vmatpush1.msra.mxu0 0.0
    %1417 = vmatprep.subr.mxu0 0.0
    %1418 = vmatpush1.msra.mxu0 0.0
    %1419 = vmatprep.subr.mxu0 0.0
    %1420 = vmatpush1.msra.mxu0 0.0
    %1421 = vmatprep.subr.mxu0 0.0
    %1422 = vmatpush1.msra.mxu0 0.0
    %1423 = vmatprep.subr.mxu0 0.0
    %1424 = vmatpush1.msra.mxu0 0.0
    %1425 = vmatprep.subr.mxu0 0.0
    %1426 = vmatpush1.msra.mxu0 0.0
    %1427 = vmatprep.subr.mxu0 0.0
    %1428 = vmatpush1.msra.mxu0 0.0
    %1429 = vmatprep.subr.mxu0 0.0
    %1430 = vmatpush1.msra.mxu0 0.0
    %1431 = vmatprep.subr.mxu0 0.0
    %1432 = vmatpush1.msra.mxu0 0.0
    %1433 = vmatprep.subr.mxu0 0.0
    %1434 = vmatpush1.msra.mxu0 0.0
    %1435 = vmatprep.subr.mxu0 0.0
    %1436 = vmatpush1.msra.mxu0 0.0
    %1437 = vmatprep.subr.mxu0 0.0
    %1438 = vmatpush1.msra.mxu0 0.0
    %1439 = vmatprep.subr.mxu0 0.0
    %1440 = vmatpush1.msra.mxu0 0.0
    %1441 = vmatprep.subr.mxu0 0.0
    %1442 = vmatpush1.msra.mxu0 0.0
    %1443 = vmatprep.subr.mxu0 0.0
    %1444 = vmatpush1.msra.mxu0 0.0
    %1445 = vmatprep.mubr.f32.mxu0 0.0
    %1446 = vmatmul.mubr.f32.gmra.mrb[0].mxu0 %v97
    %v1447 = vpop.f32.mrb[0].mxu0
    %v1448 = vadd.f32 %v88, %v1447
    %v1449 = vpop.f32.mrb[0].mxu0
    %v1450 = vadd.f32 %v88, %v1449
    %1451 = vmatprep.mubr.f32.mxu0 0.0
    %1452 = vmatmul.mubr.f32.gmra.mrb[0].mxu0 %v100
    %v1453 = vpop.f32.mrb[0].mxu0
    %v1454 = vadd.f32 %v93, %v1453
    %v1455 = vpop.f32.mrb[0].mxu0
    %v1456 = vadd.f32 %v93, %v1455
    %1457 = vdwg.mxu0
    %1458 = vmatprep.subr.mxu0 %v1202
    %1459 = vmatpush1.msra.mxu0 %v1201
    %1460 = vmatprep.subr.mxu0 %v1210
    %1461 = vmatpush1.msra.mxu0 %v1209
    %1462 = vmatprep.subr.mxu0 %v1218
    %1463 = vmatpush1.msra.mxu0 %v1217
    %1464 = vmatprep.subr.mxu0 %v1226
    %1465 = vmatpush1.msra.mxu0 %v1225
    %1466 = vmatprep.subr.mxu0 0.0
    %1467 = vmatpush1.msra.mxu0 0.0
    %1468 = vmatprep.subr.mxu0 0.0
    %1469 = vmatpush1.msra.mxu0 0.0
    %1470 = vmatprep.subr.mxu0 0.0
    %1471 = vmatpush1.msra.mxu0 0.0
    %1472 = vmatprep.subr.mxu0 0.0
    %1473 = vmatpush1.msra.mxu0 0.0
    %1474 = vmatprep.subr.mxu0 0.0
    %1475 = vmatpush1.msra.mxu0 0.0
    %1476 = vmatprep.subr.mxu0 0.0
    %1477 = vmatpush1.msra.mxu0 0.0
    %1478 = vmatprep.subr.mxu0 0.0
    %1479 = vmatpush1.msra.mxu0 0.0
    %1480 = vmatprep.subr.mxu0 0.0
    %1481 = vmatpush1.msra.mxu0 0.0
    %1482 = vmatprep.subr.mxu0 0.0
    %1483 = vmatpush1.msra.mxu0 0.0
    %1484 = vmatprep.subr.mxu0 0.0
    %1485 = vmatpush1.msra.mxu0 0.0
    %1486 = vmatprep.subr.mxu0 0.0
    %1487 = vmatpush1.msra.mxu0 0.0
    %1488 = vmatprep.subr.mxu0 0.0
    %1489 = vmatpush1.msra.mxu0 0.0
    %1490 = vmatprep.subr.mxu0 0.0
    %1491 = vmatpush1.msra.mxu0 0.0
    %1492 = vmatprep.subr.mxu0 0.0
    %1493 = vmatpush1.msra.mxu0 0.0
    %1494 = vmatprep.subr.mxu0 0.0
    %1495 = vmatpush1.msra.mxu0 0.0
    %1496 = vmatprep.subr.mxu0 0.0
    %1497 = vmatpush1.msra.mxu0 0.0
    %1498 = vmatprep.subr.mxu0 0.0
    %1499 = vmatpush1.msra.mxu0 0.0
    %1500 = vmatprep.subr.mxu0 0.0
    %1501 = vmatpush1.msra.mxu0 0.0
    %1502 = vmatprep.subr.mxu0 0.0
    %1503 = vmatpush1.msra.mxu0 0.0
    %1504 = vmatprep.subr.mxu0 0.0
    %1505 = vmatpush1.msra.mxu0 0.0
    %1506 = vmatprep.subr.mxu0 0.0
    %1507 = vmatpush1.msra.mxu0 0.0
    %1508 = vmatprep.subr.mxu0 0.0
    %1509 = vmatpush1.msra.mxu0 0.0
    %1510 = vmatprep.subr.mxu0 0.0
    %1511 = vmatpush1.msra.mxu0 0.0
    %1512 = vmatprep.subr.mxu0 0.0
    %1513 = vmatpush1.msra.mxu0 0.0
    %1514 = vmatprep.subr.mxu0 0.0
    %1515 = vmatpush1.msra.mxu0 0.0
    %1516 = vmatprep.subr.mxu0 0.0
    %1517 = vmatpush1.msra.mxu0 0.0
    %1518 = vmatprep.subr.mxu0 0.0
    %1519 = vmatpush1.msra.mxu0 0.0
    %1520 = vmatprep.subr.mxu0 0.0
    %1521 = vmatpush1.msra.mxu0 0.0
    %1522 = vmatprep.mubr.f32.mxu0 0.0
    %1523 = vmatmul.mubr.f32.gmra.mrb[0].mxu0 %v97
    %v1524 = vpop.f32.mrb[0].mxu0
    %v1525 = vadd.f32 %v88, %v1524
    %v1526 = vpop.f32.mrb[0].mxu0
    %v1527 = vadd.f32 %v88, %v1526
    %1528 = vmatprep.mubr.f32.mxu0 0.0
    %1529 = vmatmul.mubr.f32.gmra.mrb[0].mxu0 %v100
    %v1530 = vpop.f32.mrb[0].mxu0
    %v1531 = vadd.f32 %v93, %v1530
    %v1532 = vpop.f32.mrb[0].mxu0
    %v1533 = vadd.f32 %v93, %v1532
    %1534 = vdwg.mxu0
    %v1535 = vtanh.pop %v1294
    %v1536 = vtanh.pop %v1296
    %v1537 = vtanh.pop %v1371
    %v1538 = vtanh.pop %v1373
    %v1539 = vtanh.pop %v1448
    %v1540 = vtanh.pop %v1450
    %v1541 = vtanh.pop %v1525
    %v1542 = vtanh.pop %v1527
    %v1543 = vtanh.pop %v1300
    %v1544 = vtanh.pop %v1302
    %v1545 = vtanh.pop %v1377
    %v1546 = vtanh.pop %v1379
    %v1547 = vtanh.pop %v1454
    %v1548 = vtanh.pop %v1456
    %v1549 = vtanh.pop %v1531
    %v1550 = vtanh.pop %v1533
    %1551 = vset.pattern.permute.xlu0 2
    %1552 = vperm.xlu0 %1551, %v39
    %v1553 = vpop.permute.xlu0 %1552
    %1555 = vset.pattern.permute.xlu0 2
    %1556 = vperm.xlu0 %1555, %v40
    %v1557 = vpop.permute.xlu0 %1556
    %v1559 = vmul.f32 %v1535, %v1553
    %v1560 = vmul.f32 %v1536, %v1553
    %v1561 = vmul.f32 %v1537, %v1553
    %v1562 = vmul.f32 %v1538, %v1553
    %v1563 = vmul.f32 %v1539, %v1553
    %v1564 = vmul.f32 %v1540, %v1553
    %v1565 = vmul.f32 %v1541, %v1553
    %v1566 = vmul.f32 %v1542, %v1553
    %v1567 = vmul.f32 %v1543, %v1557
    %v1568 = vmul.f32 %v1544, %v1557
    %v1569 = vmul.f32 %v1545, %v1557
    %v1570 = vmul.f32 %v1546, %v1557
    %v1571 = vmul.f32 %v1547, %v1557
    %v1572 = vmul.f32 %v1548, %v1557
    %v1573 = vmul.f32 %v1549, %v1557
    %v1574 = vmul.f32 %v1550, %v1557
    %v1575 = vadd.f32 %v1559, %v1567
    %v1576 = vrot.slane %v1575, 4
    %v1577 = vadd.f32 %v1575, %v1576
    %v1578 = vrot.slane %v1577, 2
    %v1579 = vadd.f32 %v1577, %v1578
    %v1580 = vrot.slane %v1579, 1
    %v1581 = vadd.f32 %v1579, %v1580
    %v1582 = vadd.f32 %v1560, %v1568
    %v1583 = vrot.slane %v1582, 4
    %v1584 = vadd.f32 %v1582, %v1583
    %v1585 = vrot.slane %v1584, 2
    %v1586 = vadd.f32 %v1584, %v1585
    %v1587 = vrot.slane %v1586, 1
    %v1588 = vadd.f32 %v1586, %v1587
    %v1589 = vadd.f32 %v1561, %v1569
    %v1590 = vrot.slane %v1589, 4
    %v1591 = vadd.f32 %v1589, %v1590
    %v1592 = vrot.slane %v1591, 2
    %v1593 = vadd.f32 %v1591, %v1592
    %v1594 = vrot.slane %v1593, 1
    %v1595 = vadd.f32 %v1593, %v1594
    %v1596 = vadd.f32 %v1562, %v1570
    %v1597 = vrot.slane %v1596, 4
    %v1598 = vadd.f32 %v1596, %v1597
    %v1599 = vrot.slane %v1598, 2
    %v1600 = vadd.f32 %v1598, %v1599
    %v1601 = vrot.slane %v1600, 1
    %v1602 = vadd.f32 %v1600, %v1601
    %v1603 = vadd.f32 %v1563, %v1571
    %v1604 = vrot.slane %v1603, 4
    %v1605 = vadd.f32 %v1603, %v1604
    %v1606 = vrot.slane %v1605, 2
    %v1607 = vadd.f32 %v1605, %v1606
    %v1608 = vrot.slane %v1607, 1
    %v1609 = vadd.f32 %v1607, %v1608
    %v1610 = vadd.f32 %v1564, %v1572
    %v1611 = vrot.slane %v1610, 4
    %v1612 = vadd.f32 %v1610, %v1611
    %v1613 = vrot.slane %v1612, 2
    %v1614 = vadd.f32 %v1612, %v1613
    %v1615 = vrot.slane %v1614, 1
    %v1616 = vadd.f32 %v1614, %v1615
    %v1617 = vadd.f32 %v1565, %v1573
    %v1618 = vrot.slane %v1617, 4
    %v1619 = vadd.f32 %v1617, %v1618
    %v1620 = vrot.slane %v1619, 2
    %v1621 = vadd.f32 %v1619, %v1620
    %v1622 = vrot.slane %v1621, 1
    %v1623 = vadd.f32 %v1621, %v1622
    %v1624 = vadd.f32 %v1566, %v1574
    %v1625 = vrot.slane %v1624, 4
    %v1626 = vadd.f32 %v1624, %v1625
    %v1627 = vrot.slane %v1626, 2
    %v1628 = vadd.f32 %v1626, %v1627
    %v1629 = vrot.slane %v1628, 1
    %v1630 = vadd.f32 %v1628, %v1629
    %v1631 = vmul.f32 %v1535, %v1535
    %v1632 = vmul.f32 %v1536, %v1536
    %v1633 = vmul.f32 %v1537, %v1537
    %v1634 = vmul.f32 %v1538, %v1538
    %v1635 = vmul.f32 %v1539, %v1539
    %v1636 = vmul.f32 %v1540, %v1540
    %v1637 = vmul.f32 %v1541, %v1541
    %v1638 = vmul.f32 %v1542, %v1542
    %v1639 = vmul.f32 %v1543, %v1543
    %v1640 = vmul.f32 %v1544, %v1544
    %v1641 = vmul.f32 %v1545, %v1545
    %v1642 = vmul.f32 %v1546, %v1546
    %v1643 = vmul.f32 %v1547, %v1547
    %v1644 = vmul.f32 %v1548, %v1548
    %v1645 = vmul.f32 %v1549, %v1549
    %v1646 = vmul.f32 %v1550, %v1550
    %v1647 = vadd.f32 %v1631, %v1639
    %v1648 = vrot.slane %v1647, 4
    %v1649 = vadd.f32 %v1647, %v1648
    %v1650 = vrot.slane %v1649, 2
    %v1651 = vadd.f32 %v1649, %v1650
    %v1652 = vrot.slane %v1651, 1
    %v1653 = vadd.f32 %v1651, %v1652
    %v1654 = vadd.f32 %v1632, %v1640
    %v1655 = vrot.slane %v1654, 4
    %v1656 = vadd.f32 %v1654, %v1655
    %v1657 = vrot.slane %v1656, 2
    %v1658 = vadd.f32 %v1656, %v1657
    %v1659 = vrot.slane %v1658, 1
    %v1660 = vadd.f32 %v1658, %v1659
    %v1661 = vadd.f32 %v1633, %v1641
    %v1662 = vrot.slane %v1661, 4
    %v1663 = vadd.f32 %v1661, %v1662
    %v1664 = vrot.slane %v1663, 2
    %v1665 = vadd.f32 %v1663, %v1664
    %v1666 = vrot.slane %v1665, 1
    %v1667 = vadd.f32 %v1665, %v1666
    %v1668 = vadd.f32 %v1634, %v1642
    %v1669 = vrot.slane %v1668, 4
    %v1670 = vadd.f32 %v1668, %v1669
    %v1671 = vrot.slane %v1670, 2
    %v1672 = vadd.f32 %v1670, %v1671
    %v1673 = vrot.slane %v1672, 1
    %v1674 = vadd.f32 %v1672, %v1673
    %v1675 = vadd.f32 %v1635, %v1643
    %v1676 = vrot.slane %v1675, 4
    %v1677 = vadd.f32 %v1675, %v1676
    %v1678 = vrot.slane %v1677, 2
    %v1679 = vadd.f32 %v1677, %v1678
    %v1680 = vrot.slane %v1679, 1
    %v1681 = vadd.f32 %v1679, %v1680
    %v1682 = vadd.f32 %v1636, %v1644
    %v1683 = vrot.slane %v1682, 4
    %v1684 = vadd.f32 %v1682, %v1683
    %v1685 = vrot.slane %v1684, 2
    %v1686 = vadd.f32 %v1684, %v1685
    %v1687 = vrot.slane %v1686, 1
    %v1688 = vadd.f32 %v1686, %v1687
    %v1689 = vadd.f32 %v1637, %v1645
    %v1690 = vrot.slane %v1689, 4
    %v1691 = vadd.f32 %v1689, %v1690
    %v1692 = vrot.slane %v1691, 2
    %v1693 = vadd.f32 %v1691, %v1692
    %v1694 = vrot.slane %v1693, 1
    %v1695 = vadd.f32 %v1693, %v1694
    %v1696 = vadd.f32 %v1638, %v1646
    %v1697 = vrot.slane %v1696, 4
    %v1698 = vadd.f32 %v1696, %v1697
    %v1699 = vrot.slane %v1698, 2
    %v1700 = vadd.f32 %v1698, %v1699
    %v1701 = vrot.slane %v1700, 1
    %v1702 = vadd.f32 %v1700, %v1701
    %1703 = vset.pattern.permute.xlu0 2
    %1704 = vperm.xlu0 %1703, %v52
    %v1705 = vpop.permute.xlu0 %1704
    %v1707 = vmul.f32 %v1653, %v1705
    %v1708 = vmul.f32 %v1660, %v1705
    %v1709 = vmul.f32 %v1667, %v1705
    %v1710 = vmul.f32 %v1674, %v1705
    %v1711 = vmul.f32 %v1681, %v1705
    %v1712 = vmul.f32 %v1688, %v1705
    %v1713 = vmul.f32 %v1695, %v1705
    %v1714 = vmul.f32 %v1702, %v1705
    %v1715 = vrsqrt.pop %v1707
    %v1716 = vrsqrt.pop %v1708
    %v1717 = vrsqrt.pop %v1709
    %v1718 = vrsqrt.pop %v1710
    %v1719 = vrsqrt.pop %v1711
    %v1720 = vrsqrt.pop %v1712
    %v1721 = vrsqrt.pop %v1713
    %v1722 = vrsqrt.pop %v1714
    %v1723 = vmin.f32 %v1715, 1e+08
    %v1724 = vmin.f32 %v1716, 1e+08
    %v1725 = vmin.f32 %v1717, 1e+08
    %v1726 = vmin.f32 %v1718, 1e+08
    %v1727 = vmin.f32 %v1719, 1e+08
    %v1728 = vmin.f32 %v1720, 1e+08
    %v1729 = vmin.f32 %v1721, 1e+08
    %v1730 = vmin.f32 %v1722, 1e+08
    %v1731 = vmul.f32 %v1581, %v1723
    %v1732 = vmul.f32 %v1588, %v1724
    %v1733 = vmul.f32 %v1595, %v1725
    %v1734 = vmul.f32 %v1602, %v1726
    %v1735 = vmul.f32 %v1609, %v1727
    %v1736 = vmul.f32 %v1616, %v1728
    %v1737 = vmul.f32 %v1623, %v1729
    %v1738 = vmul.f32 %v1630, %v1730
    %v1739 = vmul.f32 %v1731, 1.442695
    %v1740 = vpow.pop %v1739
    %v1741 = vmul.f32 %v1732, 1.442695
    %v1742 = vpow.pop %v1741
    %v1743 = vmul.f32 %v1733, 1.442695
    %v1744 = vpow.pop %v1743
    %v1745 = vmul.f32 %v1734, 1.442695
    %v1746 = vpow.pop %v1745
    %v1747 = vmul.f32 %v1735, 1.442695
    %v1748 = vpow.pop %v1747
    %v1749 = vmul.f32 %v1736, 1.442695
    %v1750 = vpow.pop %v1749
    %v1751 = vmul.f32 %v1737, 1.442695
    %v1752 = vpow.pop %v1751
    %v1753 = vmul.f32 %v1738, 1.442695
    %v1754 = vpow.pop %v1753
    %v1755 = vadd.f32 %v618, %v1179
    %v1756 = vadd.f32 %v620, %v1181
    %v1757 = vadd.f32 %v622, %v1183
    %v1758 = vadd.f32 %v624, %v1185
    %v1759 = vadd.f32 %v626, %v1187
    %v1760 = vadd.f32 %v628, %v1189
    %v1761 = vadd.f32 %v630, %v1191
    %v1762 = vadd.f32 %v632, %v1193
    %v1763 = vadd.f32 %v1755, %v1740
    %v1764 = vadd.f32 %v1756, %v1742
    %v1765 = vadd.f32 %v1757, %v1744
    %v1766 = vadd.f32 %v1758, %v1746
    %v1767 = vadd.f32 %v1759, %v1748
    %v1768 = vadd.f32 %v1760, %v1750
    %v1769 = vadd.f32 %v1761, %v1752
    %v1770 = vadd.f32 %v1762, %v1754
    %v1771 = vrcp.pop %v1763
    %v1772 = vrcp.pop %v1764
    %v1773 = vrcp.pop %v1765
    %v1774 = vrcp.pop %v1766
    %v1775 = vrcp.pop %v1767
    %v1776 = vrcp.pop %v1768
    %v1777 = vrcp.pop %v1769
    %v1778 = vrcp.pop %v1770
    %v1779 = vmul.f32 %v618, %v1771
    %v1780 = vmul.f32 %v620, %v1772
    %v1781 = vmul.f32 %v622, %v1773
    %v1782 = vmul.f32 %v624, %v1774
    %v1783 = vmul.f32 %v626, %v1775
    %v1784 = vmul.f32 %v628, %v1776
    %v1785 = vmul.f32 %v630, %v1777
    %v1786 = vmul.f32 %v632, %v1778
    %v1787 = vmul.f32 %v1179, %v1771
    %v1788 = vmul.f32 %v1181, %v1772
    %v1789 = vmul.f32 %v1183, %v1773
    %v1790 = vmul.f32 %v1185, %v1774
    %v1791 = vmul.f32 %v1187, %v1775
    %v1792 = vmul.f32 %v1189, %v1776
    %v1793 = vmul.f32 %v1191, %v1777
    %v1794 = vmul.f32 %v1193, %v1778
    %v1795 = vmul.f32 %v1740, %v1771
    %v1796 = vmul.f32 %v1742, %v1772
    %v1797 = vmul.f32 %v1744, %v1773
    %v1798 = vmul.f32 %v1746, %v1774
    %v1799 = vmul.f32 %v1748, %v1775
    %v1800 = vmul.f32 %v1750, %v1776
    %v1801 = vmul.f32 %v1752, %v1777
    %v1802 = vmul.f32 %v1754, %v1778
    %vm1803 = vcmask 1040384
    %v1804 = vsel %vm1803, %v1779, %v1787
    %v1805 = vsel %vm1803, %v1780, %v1788
    %v1806 = vsel %vm1803, %v1781, %v1789
    %v1807 = vsel %vm1803, %v1782, %v1790
    %v1808 = vsel %vm1803, %v1783, %v1791
    %v1809 = vsel %vm1803, %v1784, %v1792
    %v1810 = vsel %vm1803, %v1785, %v1793
    %v1811 = vsel %vm1803, %v1786, %v1794
    %vm1812 = vcmask 1041408
    %v1813 = vsel %vm1812, %v1804, %v1795
    %v1814 = vsel %vm1812, %v1805, %v1796
    %v1815 = vsel %vm1812, %v1806, %v1797
    %v1816 = vsel %vm1812, %v1807, %v1798
    %v1817 = vsel %vm1812, %v1808, %v1799
    %v1818 = vsel %vm1812, %v1809, %v1800
    %v1819 = vsel %vm1812, %v1810, %v1801
    %v1820 = vsel %vm1812, %v1811, %v1802
    %v1829 = vcombine.low %v1813, %v1814
    %v1830 = vcombine.low %v1815, %v1816
    %v1831 = vcombine.low %v1817, %v1818
    %v1832 = vcombine.low %v1819, %v1820
    %1837 = vst [vmem:[#allocation6] sm:$0x77] %v1829
    %1838 = vst [vmem:[#allocation6 + $0x8] sm:$0x77] %v1830
    %1839 = vst [vmem:[#allocation6 + $0x10] sm:$0x77] %v1831
    %1840 = vst [vmem:[#allocation6 + $0x18] sm:$0x77] %v1832
    loop: start=0, step=1, limit=4
    $region22: #{metapath_preference_attention_pallas.1} parent=1 // loop_pre_header
      _
    $region23: #{metapath_preference_attention_pallas.1} parent=1 // loop_header
      %s1842 = sphi 0, %s1846
      %p1843 = scmp.ge.s32.totalorder %s1842, 4
    $region24: #{metapath_preference_attention_pallas.1} parent=1 // loop_header_branch
      %1845 = sbr.rel (%p1843) target = $region28
    $region25: #{metapath_preference_attention_pallas.1} parent=1 // loop_body
      %s1847 = smul.u32 %s1842, 8
      %s1848 = sshra.s32 %s1847, 3
      %s1849 = sand.u32 %s1847, 7
      %s1850 = smul.u32 %s1848, 8
      %s1851 = smul.addr %s1850, 8
      %s1852 = scalar_lea.vmem [#allocation2], %s1851
      %v1853 = vld [vmem:[%s1852] sm:$0xff]
      %v1854 = vld [vmem:[%s1852 + $0x8] sm:$0xff]
      %v1855 = vld [vmem:[%s1852 + $0x10] sm:$0xff]
      %v1856 = vld [vmem:[%s1852 + $0x18] sm:$0xff]
      %v1857 = vld [vmem:[%s1852 + $0x20] sm:$0xff]
      %v1858 = vld [vmem:[%s1852 + $0x28] sm:$0xff]
      %v1859 = vld [vmem:[%s1852 + $0x30] sm:$0xff]
      %v1860 = vld [vmem:[%s1852 + $0x38] sm:$0xff]
      %v1861 = vmul.f32 %v1853, %v1779
      %v1862 = vmul.f32 %v1854, %v1780
      %v1863 = vmul.f32 %v1855, %v1781
      %v1864 = vmul.f32 %v1856, %v1782
      %v1865 = vmul.f32 %v1857, %v1783
      %v1866 = vmul.f32 %v1858, %v1784
      %v1867 = vmul.f32 %v1859, %v1785
      %v1868 = vmul.f32 %v1860, %v1786
      %s1869 = sadd.s32 %s1850, 32
      %s1870 = smul.addr %s1869, 8
      %s1871 = scalar_lea.vmem [#allocation2], %s1870
      %v1872 = vld [vmem:[%s1871] sm:$0xff]
      %v1873 = vld [vmem:[%s1871 + $0x8] sm:$0xff]
      %v1874 = vld [vmem:[%s1871 + $0x10] sm:$0xff]
      %v1875 = vld [vmem:[%s1871 + $0x18] sm:$0xff]
      %v1876 = vld [vmem:[%s1871 + $0x20] sm:$0xff]
      %v1877 = vld [vmem:[%s1871 + $0x28] sm:$0xff]
      %v1878 = vld [vmem:[%s1871 + $0x30] sm:$0xff]
      %v1879 = vld [vmem:[%s1871 + $0x38] sm:$0xff]
      %v1880 = vmul.f32 %v1872, %v1787
      %v1881 = vmul.f32 %v1873, %v1788
      %v1882 = vmul.f32 %v1874, %v1789
      %v1883 = vmul.f32 %v1875, %v1790
      %v1884 = vmul.f32 %v1876, %v1791
      %v1885 = vmul.f32 %v1877, %v1792
      %v1886 = vmul.f32 %v1878, %v1793
      %v1887 = vmul.f32 %v1879, %v1794
      %v1888 = vadd.f32 %v1861, %v1880
      %v1889 = vadd.f32 %v1862, %v1881
      %v1890 = vadd.f32 %v1863, %v1882
      %v1891 = vadd.f32 %v1864, %v1883
      %v1892 = vadd.f32 %v1865, %v1884
      %v1893 = vadd.f32 %v1866, %v1885
      %v1894 = vadd.f32 %v1867, %v1886
      %v1895 = vadd.f32 %v1868, %v1887
      %s1896 = sadd.s32 %s1850, 64
      %s1897 = smul.addr %s1896, 8
      %s1898 = scalar_lea.vmem [#allocation2], %s1897
      %v1899 = vld [vmem:[%s1898] sm:$0xff]
      %v1900 = vld [vmem:[%s1898 + $0x8] sm:$0xff]
      %v1901 = vld [vmem:[%s1898 + $0x10] sm:$0xff]
      %v1902 = vld [vmem:[%s1898 + $0x18] sm:$0xff]
      %v1903 = vld [vmem:[%s1898 + $0x20] sm:$0xff]
      %v1904 = vld [vmem:[%s1898 + $0x28] sm:$0xff]
      %v1905 = vld [vmem:[%s1898 + $0x30] sm:$0xff]
      %v1906 = vld [vmem:[%s1898 + $0x38] sm:$0xff]
      %v1907 = vmul.f32 %v1899, %v1795
      %v1908 = vmul.f32 %v1900, %v1796
      %v1909 = vmul.f32 %v1901, %v1797
      %v1910 = vmul.f32 %v1902, %v1798
      %v1911 = vmul.f32 %v1903, %v1799
      %v1912 = vmul.f32 %v1904, %v1800
      %v1913 = vmul.f32 %v1905, %v1801
      %v1914 = vmul.f32 %v1906, %v1802
      %v1915 = vadd.f32 %v1888, %v1907
      %v1916 = vadd.f32 %v1889, %v1908
      %v1917 = vadd.f32 %v1890, %v1909
      %v1918 = vadd.f32 %v1891, %v1910
      %v1919 = vadd.f32 %v1892, %v1911
      %v1920 = vadd.f32 %v1893, %v1912
      %v1921 = vadd.f32 %v1894, %v1913
      %v1922 = vadd.f32 %v1895, %v1914
      %s1923 = smul.addr %s1850, 8
      %s1924 = scalar_lea.vmem [#allocation5], %s1923
      %1925 = vst [vmem:[%s1924] sm:$0xff] %v1915
      %1926 = vst [vmem:[%s1924 + $0x8] sm:$0xff] %v1916
      %1927 = vst [vmem:[%s1924 + $0x10] sm:$0xff] %v1917
      %1928 = vst [vmem:[%s1924 + $0x18] sm:$0xff] %v1918
      %1929 = vst [vmem:[%s1924 + $0x20] sm:$0xff] %v1919
      %1930 = vst [vmem:[%s1924 + $0x28] sm:$0xff] %v1920
      %1931 = vst [vmem:[%s1924 + $0x30] sm:$0xff] %v1921
      %1932 = vst [vmem:[%s1924 + $0x38] sm:$0xff] %v1922
    $region26: #{metapath_preference_attention_pallas.1} parent=1 // loop_footer
      %s1846 = sadd.s32 1, %s1842
    $region27: #{metapath_preference_attention_pallas.1} parent=1 // loop_footer_branch
      %1841 = sbr.rel target = $region23
    $region28: #{metapath_preference_attention_pallas.1} parent=1 // loop_exit
      _
    // Predicated region
    $region29: #{metapath_preference_attention_pallas.1} parent=1 // pred_check
      _
    $region30: #{metapath_preference_attention_pallas.1} parent=1 // pred_check_branch
      %1934 = sbr.rel (0) target = $region32
    $region31: #{metapath_preference_attention_pallas.1} parent=1 // pred_region
      %s1936 = ssub.s32 4096, 4096
      %1937 = vsyncadd [#allocation4], %s1936
      %s1938 = sshll.u32 [#allocation5], 4
      %s1939 = int_to_ptr.vmem [resolvable:$true] %s1938
      %1944 = dma.vmem_to_hbm [thread:$0]  %s1939, 4096, %s4, [#allocation4], 1024, 1024, 64
    $region32: #{metapath_preference_attention_pallas.1} parent=1 // pred_fallthru
      _
    // Predicated region
    $region33: #{metapath_preference_attention_pallas.1} parent=1 // pred_check
      _
    $region34: #{metapath_preference_attention_pallas.1} parent=1 // pred_check_branch
      %1946 = sbr.rel (0) target = $region36
    $region35: #{metapath_preference_attention_pallas.1} parent=1 // pred_region
      %s1948 = ssub.s32 512, 512
      %1949 = vsyncadd [#allocation7], %s1948
      %s1951 = sshll.u32 [#allocation6], 4
      %s1952 = int_to_ptr.vmem [resolvable:$true] %s1951
      %1954 = dma.vmem_to_hbm [thread:$0]  %s1952, 512, %s5, [#allocation7]
    $region36: #{metapath_preference_attention_pallas.1} parent=1 // pred_fallthru
      _
    // Predicated region
    $region37: #{metapath_preference_attention_pallas.1} parent=1 // pred_check
      _
    $region38: #{metapath_preference_attention_pallas.1} parent=1 // pred_check_branch
      %1956 = sbr.rel (0) target = $region40
    $region39: #{metapath_preference_attention_pallas.1} parent=1 // pred_region
      %1957 = dma.done [#allocation4], 4096
    $region40: #{metapath_preference_attention_pallas.1} parent=1 // pred_fallthru
      _
    // Predicated region
    $region41: #{metapath_preference_attention_pallas.1} parent=1 // pred_check
      _
    $region42: #{metapath_preference_attention_pallas.1} parent=1 // pred_check_branch
      %1959 = sbr.rel (0) target = $region44
    $region43: #{metapath_preference_attention_pallas.1} parent=1 // pred_region
      %1960 = dma.done [#allocation7], 512
    $region44: #{metapath_preference_attention_pallas.1} parent=1 // pred_fallthru
      _
    %1961 = vsyncpa [#allocation3], 1
    %1962 = vsyncpa [#allocation4], 1
    %1963 = vsyncpa [#allocation7], 1

</llo_original>
